<compile_context>
chip_gen: v5e
topology: v5e:2x2
jax: 0.10.0
libtpu: 0.0.40
codegen_flags: <defaults>
</compile_context>

<pallas_src>
import functools

import jax
import jax.numpy as jnp
from jax.experimental import pallas as pl
from jax.experimental.pallas import tpu as pltpu


def _tail_kernel(x_ref, gamma_ref, beta_ref, w_ref, b_ref, out_ref, feat_ref,
                 *, eps, hi_prec):
    """LayerNorm(C) -> spatial mean over S -> affine -> Linear(C, NCP).

    x_ref:     [TB, S, C]   feature-map tile (native dtype, f32 or bf16)
    gamma_ref: [1, C]       LayerNorm weight (f32)
    beta_ref:  [1, C]       LayerNorm bias   (f32)
    w_ref:     [C, NCP]     fc_last weight, pre-transposed, lane-padded
    b_ref:     [1, NCP]     fc_last bias, lane-padded (f32)
    out_ref:   [TB, NCP]    logits (padded; caller slices [:, :NC])
    feat_ref:  [TB, C]      hidden feature before the last Linear
    """
    prec = jax.lax.Precision.HIGHEST if hi_prec else jax.lax.Precision.DEFAULT
    tb, s, c = x_ref.shape
    f32 = jnp.float32

    x3 = x_ref[...]                               # [TB, S, C] native dtype
    x2d = x3.reshape(tb * s, c)                   # free leading-dim collapse
    xsq = x2d * x2d                               # native dtype (bf16-packed on v6e/v7x)

    # Per-row (over C) sums on the MXU instead of XLU/VPU lane reductions.
    ones = jnp.ones((c, 128), dtype=x2d.dtype)    # lane-dense result width
    ssum = jnp.dot(x2d, ones, precision=prec, preferred_element_type=f32)   # [R, 128]
    ssq = jnp.dot(xsq, ones, precision=prec, preferred_element_type=f32)    # [R, 128]

    inv_c = 1.0 / c
    mean = ssum[:, :1] * inv_c                                   # [R, 1] f32
    var = jnp.maximum(ssq[:, :1] * inv_c - mean * mean, 0.0)     # biased var (PyTorch LN)
    inv_std = jax.lax.rsqrt(var + eps)                           # [R, 1] f32

    # inv_std-weighted spatial sum; the gamma/beta affine commutes with the spatial mean.
    y3 = (x2d * inv_std).reshape(tb, s, c)                       # f32 [TB, S, C]
    term1 = jnp.sum(y3, axis=1)                                  # [TB, C]  = sum_s r*x
    term2 = jnp.sum(term1, axis=-1, keepdims=True) * inv_c       # [TB, 1]  = sum_s r*mu
    feat = (term1 - term2) * (1.0 / s) * gamma_ref[...] + beta_ref[...]      # [TB, C] f32
    feat_ref[...] = feat.astype(feat_ref.dtype)

    # fc_last on the MXU (bf16 weights in production; lane-padded to NCP).
    logits = jnp.dot(feat.astype(w_ref.dtype), w_ref[...],
                     precision=prec, preferred_element_type=f32)
    out_ref[...] = (logits + b_ref[...]).astype(out_ref.dtype)


def _vmem_capacity_bytes():
    """Physical per-core VMEM; conservative 64 MiB (v7x) fallback if unknown."""
    try:
        cap = getattr(pltpu.get_tpu_info(), "vmem_capacity_bytes", None)
        if cap:
            return int(cap)
    except Exception:
        pass
    return 64 * 1024 * 1024


def _pick_batch_tile(B, S, C, itemsize, ncp, tile_budget):
    """Largest batch tile whose in-kernel live footprint fits tile_budget bytes."""
    per_row = (3 * S * C * itemsize      # x block (double-buffered) + x^2 temp
               + 8 * S * C               # f32 upcast + inv_std-weighted product
               + 2 * S * 128 * 4         # f32 row-stat matmul results
               + 8 * (ncp + C))          # double-buffered output rows
    tb = max(1, tile_budget // per_row)
    if B >= 16:
        # Guarantee >= 2 grid steps so the "parallel" axis can use both v7x TensorCores.
        tb = min(tb, ((-(-B // 2)) + 7) // 8 * 8)
    if tb >= B:
        return B
    return min(max(8, (tb // 8) * 8), B)


@functools.partial(jax.jit, static_argnames=("tb", "ncp", "vmem_limit"))
def _forward(x, gamma, beta, w_t, bias, *, tb, ncp, vmem_limit):
    B, S, C = x.shape
    NC = w_t.shape[1]
    f32 = jnp.float32
    hi_prec = (x.dtype == jnp.float32)
    wdt = f32 if hi_prec else x.dtype            # bf16 weights for bf16 inputs

    gamma2 = gamma.reshape(1, C).astype(f32)
    beta2 = beta.reshape(1, C).astype(f32)
    w_pad = jnp.pad(w_t.astype(wdt), ((0, 0), (0, ncp - NC)))
    b_pad = jnp.pad(bias.astype(f32), (0, ncp - NC)).reshape(1, ncp)

    grid = (pl.cdiv(B, tb),)
    kernel = functools.partial(_tail_kernel, eps=1e-5, hi_prec=hi_prec)

    logits_pad, feat = pl.pallas_call(
        kernel,
        out_shape=(
            jax.ShapeDtypeStruct((B, ncp), x.dtype),   # padded logits
            jax.ShapeDtypeStruct((B, C), x.dtype),     # feat
        ),
        grid=grid,
        in_specs=[
            pl.BlockSpec((tb, S, C), lambda i: (i, 0, 0)),   # x tile (pipelined)
            pl.BlockSpec((1, C), lambda i: (0, 0)),          # gamma (resident)
            pl.BlockSpec((1, C), lambda i: (0, 0)),          # beta
            pl.BlockSpec((C, ncp), lambda i: (0, 0)),        # fc_last weight (resident)
            pl.BlockSpec((1, ncp), lambda i: (0, 0)),        # fc_last bias
        ],
        out_specs=(
            pl.BlockSpec((tb, ncp), lambda i: (i, 0)),
            pl.BlockSpec((tb, C), lambda i: (i, 0)),
        ),
        compiler_params=pltpu.CompilerParams(
            dimension_semantics=("parallel",),               # megacore on v7x
            vmem_limit_bytes=vmem_limit,
        ),
    )(x, gamma2, beta2, w_pad, b_pad)

    return logits_pad[:, :NC], feat


def model_wrapper_v1_forward(x, gamma, beta, w_t, b, *, batch_tile=None):
    """x: [B, S, C] (f32 or bf16).  Returns (logits [B, NC], feat [B, C]) in x.dtype."""
    B, S, C = x.shape
    NC = w_t.shape[1]
    ncp = ((NC + 127) // 128) * 128              # lane-dense logits width (unmasked vst)
    itemsize = jnp.dtype(x.dtype).itemsize
    wsz = 4 if x.dtype == jnp.float32 else 2

    cap = _vmem_capacity_bytes()                 # 64 MiB (v7x) .. 128 MiB (v5e/v6e)
    vmem_limit = int(cap * 0.85)                 # headroom for compiler scratch/sems
    resident = C * ncp * wsz + 4 * (ncp + 2 * C)
    tile_budget = max(1 << 20, int(vmem_limit * 0.70) - resident)

    if batch_tile is None:
        tb = _pick_batch_tile(B, S, C, itemsize, ncp, tile_budget)
    else:
        tb = min(int(batch_tile), B)
        if tb < B:
            tb = max(8, (tb // 8) * 8)

    return _forward(x, gamma, beta, w_t, b, tb=tb, ncp=ncp, vmem_limit=vmem_limit)


def _reference(x, gamma, beta, w_t, b):
    x = x.astype(jnp.float32)
    mean = jnp.mean(x, axis=-1, keepdims=True)
    var = jnp.mean((x - mean) ** 2, axis=-1, keepdims=True)
    xn = (x - mean) / jnp.sqrt(var + 1e-5) * gamma + beta
    feat = jnp.mean(xn, axis=1)
    logits = feat @ w_t + b
    return logits, feat


if __name__ == "__main__":
    key = jax.random.PRNGKey(0)

    # --- Test 1: small f32 shapes consistent with the wrapper (single grid step) ---
    # batch=2, spatial 8x8 -> S=64, dim_feat=32, num_classes=10
    B, H, W, C, NC = 2, 8, 8, 32, 10
    S = H * W
    kx, kg, kb, kw, kbias = jax.random.split(key, 5)
    x = jax.random.normal(kx, (B, S, C), dtype=jnp.float32)
    gamma = 1.0 + 0.1 * jax.random.normal(kg, (C,), dtype=jnp.float32)
    beta = 0.1 * jax.random.normal(kb, (C,), dtype=jnp.float32)
    w_t = 0.05 * jax.random.normal(kw, (C, NC), dtype=jnp.float32)
    b = 0.05 * jax.random.normal(kbias, (NC,), dtype=jnp.float32)

    logits, feat = model_wrapper_v1_forward(x, gamma, beta, w_t, b)
    jax.block_until_ready((logits, feat))
    ref_logits, ref_feat = _reference(x, gamma, beta, w_t, b)
    assert logits.shape == (B, NC) and feat.shape == (B, C)
    assert jnp.allclose(logits, ref_logits, atol=1e-5, rtol=1e-5)
    assert jnp.allclose(feat, ref_feat, atol=1e-5, rtol=1e-5)

    # --- Test 2: bf16 input, multi-step batch-tiled grid (megacore-style split) ---
    B2, C2 = 16, 128
    kx2, kg2, kb2, kw2, kbias2 = jax.random.split(jax.random.PRNGKey(1), 5)
    x2 = jax.random.normal(kx2, (B2, S, C2), dtype=jnp.float32).astype(jnp.bfloat16)
    gamma2 = 1.0 + 0.1 * jax.random.normal(kg2, (C2,), dtype=jnp.float32)
    beta2 = 0.1 * jax.random.normal(kb2, (C2,), dtype=jnp.float32)
    w_t2 = 0.05 * jax.random.normal(kw2, (C2, NC), dtype=jnp.float32)
    b2 = 0.05 * jax.random.normal(kbias2, (NC,), dtype=jnp.float32)

    logits2, feat2 = model_wrapper_v1_forward(
        x2, gamma2, beta2, w_t2, b2, batch_tile=8)   # grid = (2,)
    jax.block_until_ready((logits2, feat2))
    ref_logits2, ref_feat2 = _reference(x2, gamma2, beta2, w_t2, b2)
    assert logits2.shape == (B2, NC) and feat2.shape == (B2, C2)
    assert jnp.allclose(logits2.astype(jnp.float32), ref_logits2, atol=3e-2, rtol=3e-2)
    assert jnp.allclose(feat2.astype(jnp.float32), ref_feat2, atol=3e-2, rtol=3e-2)

    print("KERNEL_OK")
</pallas_src>

<mosaic_0001>
module attributes {stable_mosaic.version = 11 : i64} {
  func.func @_tail_kernel(%arg0: i32, %arg1: memref<2x64x32xf32, #tpu.memory_space<vmem>>, %arg2: memref<1x32xf32, #tpu.memory_space<vmem>>, %arg3: memref<1x32xf32, #tpu.memory_space<vmem>>, %arg4: memref<32x128xf32, #tpu.memory_space<vmem>>, %arg5: memref<1x128xf32, #tpu.memory_space<vmem>>, %arg6: memref<2x128xf32, #tpu.memory_space<vmem>>, %arg7: memref<2x32xf32, #tpu.memory_space<vmem>>) attributes {dimension_semantics = [#tpu.dimension_semantics<parallel>], iteration_bounds = array<i64: 1>, scalar_prefetch = 0 : i64, scratch_operands = 0 : i64, tpu.core_type = #tpu.core_type<tc>, window_params = [{transform_indices = @transform_0, window_bounds = array<i64: 2, 64, 32>}, {pipeline_mode = #tpu.pipeline_mode<synchronous>, transform_indices = @transform_1, window_bounds = array<i64: 1, 32>}, {pipeline_mode = #tpu.pipeline_mode<synchronous>, transform_indices = @transform_2, window_bounds = array<i64: 1, 32>}, {pipeline_mode = #tpu.pipeline_mode<synchronous>, transform_indices = @transform_3, window_bounds = array<i64: 32, 128>}, {pipeline_mode = #tpu.pipeline_mode<synchronous>, transform_indices = @transform_4, window_bounds = array<i64: 1, 128>}, {transform_indices = @transform_5, window_bounds = array<i64: 2, 128>}, {transform_indices = @transform_6, window_bounds = array<i64: 2, 32>}]} {
    %c0 = arith.constant 0 : index
    %c0_0 = arith.constant 0 : index
    %c0_1 = arith.constant 0 : index
    %0 = vector.load %arg1[%c0, %c0_0, %c0_1] : memref<2x64x32xf32, #tpu.memory_space<vmem>>, vector<2x64x32xf32>
    %1 = vector.shape_cast %0 : vector<2x64x32xf32> to vector<128x32xf32>
    %2 = arith.mulf %1, %1 : vector<128x32xf32>
    %cst = arith.constant 1.000000e+00 : f32
    %3 = vector.broadcast %cst : f32 to vector<32x128xf32>
    %cst_2 = arith.constant dense<0.000000e+00> : vector<128x128xf32>
    %4 = tpu.matmul %1, %3, %cst_2 {dimension_numbers = #tpu.dot_dimension_numbers<[1], [0], [0], [1], [0, 0, 1, 1], [], []>, precision = #tpu.contract_precision<fp32>} : vector<128x32xf32>, vector<32x128xf32>, vector<128x128xf32> -> vector<128x128xf32>
    %cst_3 = arith.constant dense<0.000000e+00> : vector<128x128xf32>
    %5 = tpu.matmul %2, %3, %cst_3 {dimension_numbers = #tpu.dot_dimension_numbers<[1], [0], [0], [1], [0, 0, 1, 1], [], []>, precision = #tpu.contract_precision<fp32>} : vector<128x32xf32>, vector<32x128xf32>, vector<128x128xf32> -> vector<128x128xf32>
    %6 = vector.extract_strided_slice %4 {offsets = [0, 0], sizes = [128, 1], strides = [1, 1]} : vector<128x128xf32> to vector<128x1xf32>
    %cst_4 = arith.constant 3.125000e-02 : f32
    %7 = vector.broadcast %cst_4 : f32 to vector<128x1xf32>
    %8 = arith.mulf %6, %7 : vector<128x1xf32>
    %9 = vector.extract_strided_slice %5 {offsets = [0, 0], sizes = [128, 1], strides = [1, 1]} : vector<128x128xf32> to vector<128x1xf32>
    %cst_5 = arith.constant 3.125000e-02 : f32
    %10 = vector.broadcast %cst_5 : f32 to vector<128x1xf32>
    %11 = arith.mulf %9, %10 : vector<128x1xf32>
    %12 = arith.mulf %8, %8 : vector<128x1xf32>
    %13 = arith.subf %11, %12 : vector<128x1xf32>
    %cst_6 = arith.constant 0.000000e+00 : f32
    %14 = vector.broadcast %cst_6 : f32 to vector<128x1xf32>
    %15 = arith.maximumf %13, %14 : vector<128x1xf32>
    %cst_7 = arith.constant 9.99999974E-6 : f32
    %16 = vector.broadcast %cst_7 : f32 to vector<128x1xf32>
    %17 = arith.addf %15, %16 : vector<128x1xf32>
    %18 = math.rsqrt %17 : vector<128x1xf32>
    %19 = vector.broadcast %18 : vector<128x1xf32> to vector<128x32xf32>
    %20 = arith.mulf %1, %19 : vector<128x32xf32>
    %21 = vector.shape_cast %20 : vector<128x32xf32> to vector<2x64x32xf32>
    %cst_8 = arith.constant dense<0.000000e+00> : vector<2x32xf32>
    %22 = vector.multi_reduction <add>, %21, %cst_8 [1] : vector<2x64x32xf32> to vector<2x32xf32>
    %cst_9 = arith.constant dense<0.000000e+00> : vector<2xf32>
    %23 = vector.multi_reduction <add>, %22, %cst_9 [1] : vector<2x32xf32> to vector<2xf32>
    %24 = vector.shape_cast %23 : vector<2xf32> to vector<2x1xf32>
    %cst_10 = arith.constant 3.125000e-02 : f32
    %25 = vector.broadcast %cst_10 : f32 to vector<2x1xf32>
    %26 = arith.mulf %24, %25 : vector<2x1xf32>
    %27 = vector.broadcast %26 : vector<2x1xf32> to vector<2x32xf32>
    %28 = arith.subf %22, %27 : vector<2x32xf32>
    %cst_11 = arith.constant 1.562500e-02 : f32
    %29 = vector.broadcast %cst_11 : f32 to vector<2x32xf32>
    %30 = arith.mulf %28, %29 : vector<2x32xf32>
    %c0_12 = arith.constant 0 : index
    %c0_13 = arith.constant 0 : index
    %31 = vector.load %arg2[%c0_12, %c0_13] : memref<1x32xf32, #tpu.memory_space<vmem>>, vector<1x32xf32>
    %32 = vector.broadcast %31 : vector<1x32xf32> to vector<2x32xf32>
    %33 = arith.mulf %30, %32 : vector<2x32xf32>
    %c0_14 = arith.constant 0 : index
    %c0_15 = arith.constant 0 : index
    %34 = vector.load %arg3[%c0_14, %c0_15] : memref<1x32xf32, #tpu.memory_space<vmem>>, vector<1x32xf32>
    %35 = vector.broadcast %34 : vector<1x32xf32> to vector<2x32xf32>
    %36 = arith.addf %33, %35 : vector<2x32xf32>
    %c0_16 = arith.constant 0 : index
    %c0_17 = arith.constant 0 : index
    %37 = vector.load %arg7[%c0_16, %c0_17] : memref<2x32xf32, #tpu.memory_space<vmem>>, vector<2x32xf32>
    tpu.vector_store %arg7[%c0_16, %c0_17], %36 {strides = array<i32>} : memref<2x32xf32, #tpu.memory_space<vmem>>, vector<2x32xf32>,
    %c0_18 = arith.constant 0 : index
    %c0_19 = arith.constant 0 : index
    %38 = vector.load %arg4[%c0_18, %c0_19] : memref<32x128xf32, #tpu.memory_space<vmem>>, vector<32x128xf32>
    %cst_20 = arith.constant dense<0.000000e+00> : vector<2x128xf32>
    %39 = tpu.matmul %36, %38, %cst_20 {dimension_numbers = #tpu.dot_dimension_numbers<[1], [0], [0], [1], [0, 0, 1, 1], [], []>, precision = #tpu.contract_precision<fp32>} : vector<2x32xf32>, vector<32x128xf32>, vector<2x128xf32> -> vector<2x128xf32>
    %c0_21 = arith.constant 0 : index
    %c0_22 = arith.constant 0 : index
    %40 = vector.load %arg5[%c0_21, %c0_22] : memref<1x128xf32, #tpu.memory_space<vmem>>, vector<1x128xf32>
    %41 = vector.broadcast %40 : vector<1x128xf32> to vector<2x128xf32>
    %42 = arith.addf %39, %41 : vector<2x128xf32>
    %c0_23 = arith.constant 0 : index
    %c0_24 = arith.constant 0 : index
    %43 = vector.load %arg6[%c0_23, %c0_24] : memref<2x128xf32, #tpu.memory_space<vmem>>, vector<2x128xf32>
    tpu.vector_store %arg6[%c0_23, %c0_24], %42 {strides = array<i32>} : memref<2x128xf32, #tpu.memory_space<vmem>>, vector<2x128xf32>,
    return
  }
  func.func @transform_0(%arg0: i32) -> (i32, i32, i32) {
    %c0_i32 = arith.constant 0 : i32
    %c0_i32_0 = arith.constant 0 : i32
    %c0_i32_1 = arith.constant 0 : i32
    return %arg0, %c0_i32, %c0_i32_0 : i32, i32, i32
  }
  func.func @transform_1(%arg0: i32) -> (i32, i32) {
    %c0_i32 = arith.constant 0 : i32
    %c0_i32_0 = arith.constant 0 : i32
    %c0_i32_1 = arith.constant 0 : i32
    return %c0_i32, %c0_i32_0 : i32, i32
  }
  func.func @transform_2(%arg0: i32) -> (i32, i32) {
    %c0_i32 = arith.constant 0 : i32
    %c0_i32_0 = arith.constant 0 : i32
    %c0_i32_1 = arith.constant 0 : i32
    return %c0_i32, %c0_i32_0 : i32, i32
  }
  func.func @transform_3(%arg0: i32) -> (i32, i32) {
    %c0_i32 = arith.constant 0 : i32
    %c0_i32_0 = arith.constant 0 : i32
    %c0_i32_1 = arith.constant 0 : i32
    return %c0_i32, %c0_i32_0 : i32, i32
  }
  func.func @transform_4(%arg0: i32) -> (i32, i32) {
    %c0_i32 = arith.constant 0 : i32
    %c0_i32_0 = arith.constant 0 : i32
    %c0_i32_1 = arith.constant 0 : i32
    return %c0_i32, %c0_i32_0 : i32, i32
  }
  func.func @transform_5(%arg0: i32) -> (i32, i32) {
    %c0_i32 = arith.constant 0 : i32
    %c0_i32_0 = arith.constant 0 : i32
    return %arg0, %c0_i32 : i32, i32
  }
  func.func @transform_6(%arg0: i32) -> (i32, i32) {
    %c0_i32 = arith.constant 0 : i32
    %c0_i32_0 = arith.constant 0 : i32
    return %arg0, %c0_i32 : i32, i32
  }
}

</mosaic_0001>

<llo_original>
// kernel: _forward.1
$region0: #{_forward.1}
  #allocation0 [shape = 'u32[]', space=smem, size = 0x4, offset = 0x4, fixed_abs, tag = 'smem constant byte address 0x4 - core index']
  #allocation1 [shape = 'u32[72,128]{1,0:T(1,128)}', space=vmem, size = 0x9000, scoped, tag = 'internal scratch']
  %s0 = inlined_call_operand.vmem [shape: f32[2,64,32], index: 0, kind: input, shape index: {}]
  %s1 = inlined_call_operand.vmem [shape: f32[1,32], index: 1, kind: input, shape index: {}]
  %s2 = inlined_call_operand.vmem [shape: f32[1,32], index: 2, kind: input, shape index: {}]
  %s3 = inlined_call_operand.vmem [shape: f32[32,128], index: 3, kind: input, shape index: {}]
  %s4 = inlined_call_operand.vmem [shape: f32[1,128], index: 4, kind: input, shape index: {}]
  %s5 = inlined_call_operand.hbm [shape: f32[2,128], index: 5, kind: output, shape index: {0}]
  %s6 = inlined_call_operand.hbm [shape: f32[2,32], index: 6, kind: output, shape index: {1}]
  %7 = xla_tuple %s5, %s6
  %s8 = sld [smem:[#allocation0]]
  $region38: #{_forward.1} parent=0
    _
  %s10 = ssub.s32 1, %s8
  %s11 = scalar_select 0, %s10, %s8
  $region1: #{_forward.1} parent=0
    #allocation2 [shape = 'u8[1024]{0}', space=vmem, size = 0x400, scoped, tag = 'output window, operand 0, single buffered']
    #allocation3 [shape = 's32[1]{0}', space=sflag, size = 0x4, scoped, tag = 'scoped memory for _forward.1']
    #allocation4 [shape = 'u8[1024]{0}', space=vmem, size = 0x400, scoped, tag = 'output window, operand 1, single buffered']
    #allocation5 [shape = 's32[1]{0}', space=sflag, size = 0x4, scoped, tag = 'scoped memory for _forward.1']
    %12 = vsyncpa [#allocation3], 0
    %13 = vsyncpa [#allocation5], 0
    // Predicated region
    $region2: #{_forward.1} parent=1 // pred_check
      _
    $region3: #{_forward.1} parent=1 // pred_check_branch
      %15 = sbr.rel (0) target = $region5
    $region4: #{_forward.1} parent=1 // pred_region
      _
    $region5: #{_forward.1} parent=1 // pred_fallthru
      _
    // Predicated region
    $region6: #{_forward.1} parent=1 // pred_check
      _
    $region7: #{_forward.1} parent=1 // pred_check_branch
      %17 = sbr.rel (0) target = $region9
    $region8: #{_forward.1} parent=1 // pred_region
      _
    $region9: #{_forward.1} parent=1 // pred_fallthru
      _
    // Predicated region
    $region10: #{_forward.1} parent=1 // pred_check
      _
    $region11: #{_forward.1} parent=1 // pred_check_branch
      %19 = sbr.rel (0) target = $region13
    $region12: #{_forward.1} parent=1 // pred_region
      _
    $region13: #{_forward.1} parent=1 // pred_fallthru
      _
    // Predicated region
    $region14: #{_forward.1} parent=1 // pred_check
      _
    $region15: #{_forward.1} parent=1 // pred_check_branch
      %21 = sbr.rel (0) target = $region17
    $region16: #{_forward.1} parent=1 // pred_region
      _
    $region17: #{_forward.1} parent=1 // pred_fallthru
      _
    // Predicated region
    $region18: #{_forward.1} parent=1 // pred_check
      _
    $region19: #{_forward.1} parent=1 // pred_check_branch
      %23 = sbr.rel (0) target = $region21
    $region20: #{_forward.1} parent=1 // pred_region
      _
    $region21: #{_forward.1} parent=1 // pred_fallthru
      _
    %v24 = vld [vmem:[%s0] sm:$0xff]
    %v25 = vld [vmem:[%s0 + $0x8] sm:$0xff]
    %v26 = vld [vmem:[%s0 + $0x10] sm:$0xff]
    %v27 = vld [vmem:[%s0 + $0x18] sm:$0xff]
    %v28 = vld [vmem:[%s0 + $0x20] sm:$0xff]
    %v29 = vld [vmem:[%s0 + $0x28] sm:$0xff]
    %v30 = vld [vmem:[%s0 + $0x30] sm:$0xff]
    %v31 = vld [vmem:[%s0 + $0x38] sm:$0xff]
    %v32 = vld [vmem:[%s0 + $0x40] sm:$0xff]
    %v33 = vld [vmem:[%s0 + $0x48] sm:$0xff]
    %v34 = vld [vmem:[%s0 + $0x50] sm:$0xff]
    %v35 = vld [vmem:[%s0 + $0x58] sm:$0xff]
    %v36 = vld [vmem:[%s0 + $0x60] sm:$0xff]
    %v37 = vld [vmem:[%s0 + $0x68] sm:$0xff]
    %v38 = vld [vmem:[%s0 + $0x70] sm:$0xff]
    %v39 = vld [vmem:[%s0 + $0x78] sm:$0xff]
    %v40 = vmul.f32 %v24, %v24
    %v41 = vmul.f32 %v25, %v25
    %v42 = vmul.f32 %v26, %v26
    %v43 = vmul.f32 %v27, %v27
    %v44 = vmul.f32 %v28, %v28
    %v45 = vmul.f32 %v29, %v29
    %v46 = vmul.f32 %v30, %v30
    %v47 = vmul.f32 %v31, %v31
    %v48 = vmul.f32 %v32, %v32
    %v49 = vmul.f32 %v33, %v33
    %v50 = vmul.f32 %v34, %v34
    %v51 = vmul.f32 %v35, %v35
    %v52 = vmul.f32 %v36, %v36
    %v53 = vmul.f32 %v37, %v37
    %v54 = vmul.f32 %v38, %v38
    %v55 = vmul.f32 %v39, %v39
    %vm56 = vcmask 261120
    %v58 = vsel %vm56, %v24, 0
    %v61 = vsel %vm56, %v25, 0
    %v64 = vsel %vm56, %v26, 0
    %v67 = vsel %vm56, %v27, 0
    %v70 = vsel %vm56, %v28, 0
    %v73 = vsel %vm56, %v29, 0
    %v76 = vsel %vm56, %v30, 0
    %v79 = vsel %vm56, %v31, 0
    %v82 = vsel %vm56, %v32, 0
    %v85 = vsel %vm56, %v33, 0
    %v88 = vsel %vm56, %v34, 0
    %v91 = vsel %vm56, %v35, 0
    %v94 = vsel %vm56, %v36, 0
    %v97 = vsel %vm56, %v37, 0
    %v100 = vsel %vm56, %v38, 0
    %v103 = vsel %vm56, %v39, 0
    %105 = vmatpush.msra.mxu0 0.0
    %106 = vmatpush.msra.mxu0 0.0
    %107 = vmatpush.msra.mxu0 0.0
    %108 = vmatpush.msra.mxu0 0.0
    %109 = vmatpush.msra.mxu0 0.0
    %110 = vmatpush.msra.mxu0 0.0
    %111 = vmatpush.msra.mxu0 0.0
    %112 = vmatpush.msra.mxu0 0.0
    %113 = vmatpush.msra.mxu0 0.0
    %114 = vmatpush.msra.mxu0 0.0
    %115 = vmatpush.msra.mxu0 0.0
    %116 = vmatpush.msra.mxu0 0.0
    %117 = vmatpush.msra.mxu0 1.0
    %118 = vmatpush.msra.mxu0 1.0
    %119 = vmatpush.msra.mxu0 1.0
    %120 = vmatpush.msra.mxu0 1.0
    %v121 = vand.u32 %v58, 4294901760
    %v122 = vsub.f32 %v58, %v121
    %v123 = vand.u32 %v122, 4294901760
    %v124 = vsub.f32 %v122, %v123
    %v125 = vand.u32 %v124, 4294901760
    %126 = vmatmul.f32.gmra.mxu0 %v125
    %v127 = vpop.f32.mrf.mxu0
    %v128 = vadd.f32 0.0, %v127
    %v129 = vand.u32 %v61, 4294901760
    %v130 = vsub.f32 %v61, %v129
    %v131 = vand.u32 %v130, 4294901760
    %v132 = vsub.f32 %v130, %v131
    %v133 = vand.u32 %v132, 4294901760
    %134 = vmatmul.f32.gmra.mxu0 %v133
    %v135 = vpop.f32.mrf.mxu0
    %v136 = vadd.f32 0.0, %v135
    %v137 = vand.u32 %v64, 4294901760
    %v138 = vsub.f32 %v64, %v137
    %v139 = vand.u32 %v138, 4294901760
    %v140 = vsub.f32 %v138, %v139
    %v141 = vand.u32 %v140, 4294901760
    %142 = vmatmul.f32.gmra.mxu0 %v141
    %v143 = vpop.f32.mrf.mxu0
    %v144 = vadd.f32 0.0, %v143
    %v145 = vand.u32 %v67, 4294901760
    %v146 = vsub.f32 %v67, %v145
    %v147 = vand.u32 %v146, 4294901760
    %v148 = vsub.f32 %v146, %v147
    %v149 = vand.u32 %v148, 4294901760
    %150 = vmatmul.f32.gmra.mxu0 %v149
    %v151 = vpop.f32.mrf.mxu0
    %v152 = vadd.f32 0.0, %v151
    %v153 = vand.u32 %v70, 4294901760
    %v154 = vsub.f32 %v70, %v153
    %v155 = vand.u32 %v154, 4294901760
    %v156 = vsub.f32 %v154, %v155
    %v157 = vand.u32 %v156, 4294901760
    %158 = vmatmul.f32.gmra.mxu0 %v157
    %v159 = vpop.f32.mrf.mxu0
    %v160 = vadd.f32 0.0, %v159
    %v161 = vand.u32 %v73, 4294901760
    %v162 = vsub.f32 %v73, %v161
    %v163 = vand.u32 %v162, 4294901760
    %v164 = vsub.f32 %v162, %v163
    %v165 = vand.u32 %v164, 4294901760
    %166 = vmatmul.f32.gmra.mxu0 %v165
    %v167 = vpop.f32.mrf.mxu0
    %v168 = vadd.f32 0.0, %v167
    %v169 = vand.u32 %v76, 4294901760
    %v170 = vsub.f32 %v76, %v169
    %v171 = vand.u32 %v170, 4294901760
    %v172 = vsub.f32 %v170, %v171
    %v173 = vand.u32 %v172, 4294901760
    %174 = vmatmul.f32.gmra.mxu0 %v173
    %v175 = vpop.f32.mrf.mxu0
    %v176 = vadd.f32 0.0, %v175
    %v177 = vand.u32 %v79, 4294901760
    %v178 = vsub.f32 %v79, %v177
    %v179 = vand.u32 %v178, 4294901760
    %v180 = vsub.f32 %v178, %v179
    %v181 = vand.u32 %v180, 4294901760
    %182 = vmatmul.f32.gmra.mxu0 %v181
    %v183 = vpop.f32.mrf.mxu0
    %v184 = vadd.f32 0.0, %v183
    %v185 = vand.u32 %v82, 4294901760
    %v186 = vsub.f32 %v82, %v185
    %v187 = vand.u32 %v186, 4294901760
    %v188 = vsub.f32 %v186, %v187
    %v189 = vand.u32 %v188, 4294901760
    %190 = vmatmul.f32.gmra.mxu0 %v189
    %v191 = vpop.f32.mrf.mxu0
    %v192 = vadd.f32 0.0, %v191
    %v193 = vand.u32 %v85, 4294901760
    %v194 = vsub.f32 %v85, %v193
    %v195 = vand.u32 %v194, 4294901760
    %v196 = vsub.f32 %v194, %v195
    %v197 = vand.u32 %v196, 4294901760
    %198 = vmatmul.f32.gmra.mxu0 %v197
    %v199 = vpop.f32.mrf.mxu0
    %v200 = vadd.f32 0.0, %v199
    %v201 = vand.u32 %v88, 4294901760
    %v202 = vsub.f32 %v88, %v201
    %v203 = vand.u32 %v202, 4294901760
    %v204 = vsub.f32 %v202, %v203
    %v205 = vand.u32 %v204, 4294901760
    %206 = vmatmul.f32.gmra.mxu0 %v205
    %v207 = vpop.f32.mrf.mxu0
    %v208 = vadd.f32 0.0, %v207
    %v209 = vand.u32 %v91, 4294901760
    %v210 = vsub.f32 %v91, %v209
    %v211 = vand.u32 %v210, 4294901760
    %v212 = vsub.f32 %v210, %v211
    %v213 = vand.u32 %v212, 4294901760
    %214 = vmatmul.f32.gmra.mxu0 %v213
    %v215 = vpop.f32.mrf.mxu0
    %v216 = vadd.f32 0.0, %v215
    %v217 = vand.u32 %v94, 4294901760
    %v218 = vsub.f32 %v94, %v217
    %v219 = vand.u32 %v218, 4294901760
    %v220 = vsub.f32 %v218, %v219
    %v221 = vand.u32 %v220, 4294901760
    %222 = vmatmul.f32.gmra.mxu0 %v221
    %v223 = vpop.f32.mrf.mxu0
    %v224 = vadd.f32 0.0, %v223
    %v225 = vand.u32 %v97, 4294901760
    %v226 = vsub.f32 %v97, %v225
    %v227 = vand.u32 %v226, 4294901760
    %v228 = vsub.f32 %v226, %v227
    %v229 = vand.u32 %v228, 4294901760
    %230 = vmatmul.f32.gmra.mxu0 %v229
    %v231 = vpop.f32.mrf.mxu0
    %v232 = vadd.f32 0.0, %v231
    %v233 = vand.u32 %v100, 4294901760
    %v234 = vsub.f32 %v100, %v233
    %v235 = vand.u32 %v234, 4294901760
    %v236 = vsub.f32 %v234, %v235
    %v237 = vand.u32 %v236, 4294901760
    %238 = vmatmul.f32.gmra.mxu0 %v237
    %v239 = vpop.f32.mrf.mxu0
    %v240 = vadd.f32 0.0, %v239
    %v241 = vand.u32 %v103, 4294901760
    %v242 = vsub.f32 %v103, %v241
    %v243 = vand.u32 %v242, 4294901760
    %v244 = vsub.f32 %v242, %v243
    %v245 = vand.u32 %v244, 4294901760
    %246 = vmatmul.f32.gmra.mxu0 %v245
    %v247 = vpop.f32.mrf.mxu0
    %v248 = vadd.f32 0.0, %v247
    %249 = vdwg.mxu0
    %250 = vmatpush.msra.mxu0 0.0
    %251 = vmatpush.msra.mxu0 0.0
    %252 = vmatpush.msra.mxu0 0.0
    %253 = vmatpush.msra.mxu0 0.0
    %254 = vmatpush.msra.mxu0 0.0
    %255 = vmatpush.msra.mxu0 0.0
    %256 = vmatpush.msra.mxu0 0.0
    %257 = vmatpush.msra.mxu0 0.0
    %258 = vmatpush.msra.mxu0 0.0
    %259 = vmatpush.msra.mxu0 0.0
    %260 = vmatpush.msra.mxu0 0.0
    %261 = vmatpush.msra.mxu0 0.0
    %262 = vmatpush.msra.mxu0 0.0
    %263 = vmatpush.msra.mxu0 0.0
    %264 = vmatpush.msra.mxu0 0.0
    %265 = vmatpush.msra.mxu0 0.0
    %v266 = vand.u32 %v58, 4294901760
    %267 = vmatmul.f32.gmra.mxu0 %v266
    %v268 = vpop.f32.mrf.mxu0
    %v269 = vadd.f32 %v128, %v268
    %v270 = vand.u32 %v61, 4294901760
    %271 = vmatmul.f32.gmra.mxu0 %v270
    %v272 = vpop.f32.mrf.mxu0
    %v273 = vadd.f32 %v136, %v272
    %v274 = vand.u32 %v64, 4294901760
    %275 = vmatmul.f32.gmra.mxu0 %v274
    %v276 = vpop.f32.mrf.mxu0
    %v277 = vadd.f32 %v144, %v276
    %v278 = vand.u32 %v67, 4294901760
    %279 = vmatmul.f32.gmra.mxu0 %v278
    %v280 = vpop.f32.mrf.mxu0
    %v281 = vadd.f32 %v152, %v280
    %v282 = vand.u32 %v70, 4294901760
    %283 = vmatmul.f32.gmra.mxu0 %v282
    %v284 = vpop.f32.mrf.mxu0
    %v285 = vadd.f32 %v160, %v284
    %v286 = vand.u32 %v73, 4294901760
    %287 = vmatmul.f32.gmra.mxu0 %v286
    %v288 = vpop.f32.mrf.mxu0
    %v289 = vadd.f32 %v168, %v288
    %v290 = vand.u32 %v76, 4294901760
    %291 = vmatmul.f32.gmra.mxu0 %v290
    %v292 = vpop.f32.mrf.mxu0
    %v293 = vadd.f32 %v176, %v292
    %v294 = vand.u32 %v79, 4294901760
    %295 = vmatmul.f32.gmra.mxu0 %v294
    %v296 = vpop.f32.mrf.mxu0
    %v297 = vadd.f32 %v184, %v296
    %v298 = vand.u32 %v82, 4294901760
    %299 = vmatmul.f32.gmra.mxu0 %v298
    %v300 = vpop.f32.mrf.mxu0
    %v301 = vadd.f32 %v192, %v300
    %v302 = vand.u32 %v85, 4294901760
    %303 = vmatmul.f32.gmra.mxu0 %v302
    %v304 = vpop.f32.mrf.mxu0
    %v305 = vadd.f32 %v200, %v304
    %v306 = vand.u32 %v88, 4294901760
    %307 = vmatmul.f32.gmra.mxu0 %v306
    %v308 = vpop.f32.mrf.mxu0
    %v309 = vadd.f32 %v208, %v308
    %v310 = vand.u32 %v91, 4294901760
    %311 = vmatmul.f32.gmra.mxu0 %v310
    %v312 = vpop.f32.mrf.mxu0
    %v313 = vadd.f32 %v216, %v312
    %v314 = vand.u32 %v94, 4294901760
    %315 = vmatmul.f32.gmra.mxu0 %v314
    %v316 = vpop.f32.mrf.mxu0
    %v317 = vadd.f32 %v224, %v316
    %v318 = vand.u32 %v97, 4294901760
    %319 = vmatmul.f32.gmra.mxu0 %v318
    %v320 = vpop.f32.mrf.mxu0
    %v321 = vadd.f32 %v232, %v320
    %v322 = vand.u32 %v100, 4294901760
    %323 = vmatmul.f32.gmra.mxu0 %v322
    %v324 = vpop.f32.mrf.mxu0
    %v325 = vadd.f32 %v240, %v324
    %v326 = vand.u32 %v103, 4294901760
    %327 = vmatmul.f32.gmra.mxu0 %v326
    %v328 = vpop.f32.mrf.mxu0
    %v329 = vadd.f32 %v248, %v328
    %330 = vdwg.mxu0
    %331 = vmatpush.msra.mxu0 0.0
    %332 = vmatpush.msra.mxu0 0.0
    %333 = vmatpush.msra.mxu0 0.0
    %334 = vmatpush.msra.mxu0 0.0
    %335 = vmatpush.msra.mxu0 0.0
    %336 = vmatpush.msra.mxu0 0.0
    %337 = vmatpush.msra.mxu0 0.0
    %338 = vmatpush.msra.mxu0 0.0
    %339 = vmatpush.msra.mxu0 0.0
    %340 = vmatpush.msra.mxu0 0.0
    %341 = vmatpush.msra.mxu0 0.0
    %342 = vmatpush.msra.mxu0 0.0
    %343 = vmatpush.msra.mxu0 0.0
    %344 = vmatpush.msra.mxu0 0.0
    %345 = vmatpush.msra.mxu0 0.0
    %346 = vmatpush.msra.mxu0 0.0
    %v347 = vand.u32 %v58, 4294901760
    %v348 = vsub.f32 %v58, %v347
    %349 = vmatmul.f32.gmra.mxu0 %v348
    %v350 = vpop.f32.mrf.mxu0
    %v351 = vadd.f32 %v269, %v350
    %v352 = vand.u32 %v61, 4294901760
    %v353 = vsub.f32 %v61, %v352
    %354 = vmatmul.f32.gmra.mxu0 %v353
    %v355 = vpop.f32.mrf.mxu0
    %v356 = vadd.f32 %v273, %v355
    %v357 = vand.u32 %v64, 4294901760
    %v358 = vsub.f32 %v64, %v357
    %359 = vmatmul.f32.gmra.mxu0 %v358
    %v360 = vpop.f32.mrf.mxu0
    %v361 = vadd.f32 %v277, %v360
    %v362 = vand.u32 %v67, 4294901760
    %v363 = vsub.f32 %v67, %v362
    %364 = vmatmul.f32.gmra.mxu0 %v363
    %v365 = vpop.f32.mrf.mxu0
    %v366 = vadd.f32 %v281, %v365
    %v367 = vand.u32 %v70, 4294901760
    %v368 = vsub.f32 %v70, %v367
    %369 = vmatmul.f32.gmra.mxu0 %v368
    %v370 = vpop.f32.mrf.mxu0
    %v371 = vadd.f32 %v285, %v370
    %v372 = vand.u32 %v73, 4294901760
    %v373 = vsub.f32 %v73, %v372
    %374 = vmatmul.f32.gmra.mxu0 %v373
    %v375 = vpop.f32.mrf.mxu0
    %v376 = vadd.f32 %v289, %v375
    %v377 = vand.u32 %v76, 4294901760
    %v378 = vsub.f32 %v76, %v377
    %379 = vmatmul.f32.gmra.mxu0 %v378
    %v380 = vpop.f32.mrf.mxu0
    %v381 = vadd.f32 %v293, %v380
    %v382 = vand.u32 %v79, 4294901760
    %v383 = vsub.f32 %v79, %v382
    %384 = vmatmul.f32.gmra.mxu0 %v383
    %v385 = vpop.f32.mrf.mxu0
    %v386 = vadd.f32 %v297, %v385
    %v387 = vand.u32 %v82, 4294901760
    %v388 = vsub.f32 %v82, %v387
    %389 = vmatmul.f32.gmra.mxu0 %v388
    %v390 = vpop.f32.mrf.mxu0
    %v391 = vadd.f32 %v301, %v390
    %v392 = vand.u32 %v85, 4294901760
    %v393 = vsub.f32 %v85, %v392
    %394 = vmatmul.f32.gmra.mxu0 %v393
    %v395 = vpop.f32.mrf.mxu0
    %v396 = vadd.f32 %v305, %v395
    %v397 = vand.u32 %v88, 4294901760
    %v398 = vsub.f32 %v88, %v397
    %399 = vmatmul.f32.gmra.mxu0 %v398
    %v400 = vpop.f32.mrf.mxu0
    %v401 = vadd.f32 %v309, %v400
    %v402 = vand.u32 %v91, 4294901760
    %v403 = vsub.f32 %v91, %v402
    %404 = vmatmul.f32.gmra.mxu0 %v403
    %v405 = vpop.f32.mrf.mxu0
    %v406 = vadd.f32 %v313, %v405
    %v407 = vand.u32 %v94, 4294901760
    %v408 = vsub.f32 %v94, %v407
    %409 = vmatmul.f32.gmra.mxu0 %v408
    %v410 = vpop.f32.mrf.mxu0
    %v411 = vadd.f32 %v317, %v410
    %v412 = vand.u32 %v97, 4294901760
    %v413 = vsub.f32 %v97, %v412
    %414 = vmatmul.f32.gmra.mxu0 %v413
    %v415 = vpop.f32.mrf.mxu0
    %v416 = vadd.f32 %v321, %v415
    %v417 = vand.u32 %v100, 4294901760
    %v418 = vsub.f32 %v100, %v417
    %419 = vmatmul.f32.gmra.mxu0 %v418
    %v420 = vpop.f32.mrf.mxu0
    %v421 = vadd.f32 %v325, %v420
    %v422 = vand.u32 %v103, 4294901760
    %v423 = vsub.f32 %v103, %v422
    %424 = vmatmul.f32.gmra.mxu0 %v423
    %v425 = vpop.f32.mrf.mxu0
    %v426 = vadd.f32 %v329, %v425
    %427 = vdwg.mxu0
    %428 = vmatpush.msra.mxu0 0.0
    %429 = vmatpush.msra.mxu0 0.0
    %430 = vmatpush.msra.mxu0 0.0
    %431 = vmatpush.msra.mxu0 0.0
    %432 = vmatpush.msra.mxu0 0.0
    %433 = vmatpush.msra.mxu0 0.0
    %434 = vmatpush.msra.mxu0 0.0
    %435 = vmatpush.msra.mxu0 0.0
    %436 = vmatpush.msra.mxu0 0.0
    %437 = vmatpush.msra.mxu0 0.0
    %438 = vmatpush.msra.mxu0 0.0
    %439 = vmatpush.msra.mxu0 0.0
    %440 = vmatpush.msra.mxu0 1.0
    %441 = vmatpush.msra.mxu0 1.0
    %442 = vmatpush.msra.mxu0 1.0
    %443 = vmatpush.msra.mxu0 1.0
    %v444 = vand.u32 %v58, 4294901760
    %v445 = vsub.f32 %v58, %v444
    %v446 = vand.u32 %v445, 4294901760
    %447 = vmatmul.f32.gmra.mxu0 %v446
    %v448 = vpop.f32.mrf.mxu0
    %v449 = vadd.f32 %v351, %v448
    %v450 = vand.u32 %v61, 4294901760
    %v451 = vsub.f32 %v61, %v450
    %v452 = vand.u32 %v451, 4294901760
    %453 = vmatmul.f32.gmra.mxu0 %v452
    %v454 = vpop.f32.mrf.mxu0
    %v455 = vadd.f32 %v356, %v454
    %v456 = vand.u32 %v64, 4294901760
    %v457 = vsub.f32 %v64, %v456
    %v458 = vand.u32 %v457, 4294901760
    %459 = vmatmul.f32.gmra.mxu0 %v458
    %v460 = vpop.f32.mrf.mxu0
    %v461 = vadd.f32 %v361, %v460
    %v462 = vand.u32 %v67, 4294901760
    %v463 = vsub.f32 %v67, %v462
    %v464 = vand.u32 %v463, 4294901760
    %465 = vmatmul.f32.gmra.mxu0 %v464
    %v466 = vpop.f32.mrf.mxu0
    %v467 = vadd.f32 %v366, %v466
    %v468 = vand.u32 %v70, 4294901760
    %v469 = vsub.f32 %v70, %v468
    %v470 = vand.u32 %v469, 4294901760
    %471 = vmatmul.f32.gmra.mxu0 %v470
    %v472 = vpop.f32.mrf.mxu0
    %v473 = vadd.f32 %v371, %v472
    %v474 = vand.u32 %v73, 4294901760
    %v475 = vsub.f32 %v73, %v474
    %v476 = vand.u32 %v475, 4294901760
    %477 = vmatmul.f32.gmra.mxu0 %v476
    %v478 = vpop.f32.mrf.mxu0
    %v479 = vadd.f32 %v376, %v478
    %v480 = vand.u32 %v76, 4294901760
    %v481 = vsub.f32 %v76, %v480
    %v482 = vand.u32 %v481, 4294901760
    %483 = vmatmul.f32.gmra.mxu0 %v482
    %v484 = vpop.f32.mrf.mxu0
    %v485 = vadd.f32 %v381, %v484
    %v486 = vand.u32 %v79, 4294901760
    %v487 = vsub.f32 %v79, %v486
    %v488 = vand.u32 %v487, 4294901760
    %489 = vmatmul.f32.gmra.mxu0 %v488
    %v490 = vpop.f32.mrf.mxu0
    %v491 = vadd.f32 %v386, %v490
    %v492 = vand.u32 %v82, 4294901760
    %v493 = vsub.f32 %v82, %v492
    %v494 = vand.u32 %v493, 4294901760
    %495 = vmatmul.f32.gmra.mxu0 %v494
    %v496 = vpop.f32.mrf.mxu0
    %v497 = vadd.f32 %v391, %v496
    %v498 = vand.u32 %v85, 4294901760
    %v499 = vsub.f32 %v85, %v498
    %v500 = vand.u32 %v499, 4294901760
    %501 = vmatmul.f32.gmra.mxu0 %v500
    %v502 = vpop.f32.mrf.mxu0
    %v503 = vadd.f32 %v396, %v502
    %v504 = vand.u32 %v88, 4294901760
    %v505 = vsub.f32 %v88, %v504
    %v506 = vand.u32 %v505, 4294901760
    %507 = vmatmul.f32.gmra.mxu0 %v506
    %v508 = vpop.f32.mrf.mxu0
    %v509 = vadd.f32 %v401, %v508
    %v510 = vand.u32 %v91, 4294901760
    %v511 = vsub.f32 %v91, %v510
    %v512 = vand.u32 %v511, 4294901760
    %513 = vmatmul.f32.gmra.mxu0 %v512
    %v514 = vpop.f32.mrf.mxu0
    %v515 = vadd.f32 %v406, %v514
    %v516 = vand.u32 %v94, 4294901760
    %v517 = vsub.f32 %v94, %v516
    %v518 = vand.u32 %v517, 4294901760
    %519 = vmatmul.f32.gmra.mxu0 %v518
    %v520 = vpop.f32.mrf.mxu0
    %v521 = vadd.f32 %v411, %v520
    %v522 = vand.u32 %v97, 4294901760
    %v523 = vsub.f32 %v97, %v522
    %v524 = vand.u32 %v523, 4294901760
    %525 = vmatmul.f32.gmra.mxu0 %v524
    %v526 = vpop.f32.mrf.mxu0
    %v527 = vadd.f32 %v416, %v526
    %v528 = vand.u32 %v100, 4294901760
    %v529 = vsub.f32 %v100, %v528
    %v530 = vand.u32 %v529, 4294901760
    %531 = vmatmul.f32.gmra.mxu0 %v530
    %v532 = vpop.f32.mrf.mxu0
    %v533 = vadd.f32 %v421, %v532
    %v534 = vand.u32 %v103, 4294901760
    %v535 = vsub.f32 %v103, %v534
    %v536 = vand.u32 %v535, 4294901760
    %537 = vmatmul.f32.gmra.mxu0 %v536
    %v538 = vpop.f32.mrf.mxu0
    %v539 = vadd.f32 %v426, %v538
    %540 = vdwg.mxu0
    %541 = vmatpush.msra.mxu0 0.0
    %542 = vmatpush.msra.mxu0 0.0
    %543 = vmatpush.msra.mxu0 0.0
    %544 = vmatpush.msra.mxu0 0.0
    %545 = vmatpush.msra.mxu0 0.0
    %546 = vmatpush.msra.mxu0 0.0
    %547 = vmatpush.msra.mxu0 0.0
    %548 = vmatpush.msra.mxu0 0.0
    %549 = vmatpush.msra.mxu0 0.0
    %550 = vmatpush.msra.mxu0 0.0
    %551 = vmatpush.msra.mxu0 0.0
    %552 = vmatpush.msra.mxu0 0.0
    %553 = vmatpush.msra.mxu0 0.0
    %554 = vmatpush.msra.mxu0 0.0
    %555 = vmatpush.msra.mxu0 0.0
    %556 = vmatpush.msra.mxu0 0.0
    %v557 = vand.u32 %v58, 4294901760
    %558 = vmatmul.f32.gmra.mxu0 %v557
    %v559 = vpop.f32.mrf.mxu0
    %v560 = vadd.f32 %v449, %v559
    %v561 = vand.u32 %v61, 4294901760
    %562 = vmatmul.f32.gmra.mxu0 %v561
    %v563 = vpop.f32.mrf.mxu0
    %v564 = vadd.f32 %v455, %v563
    %v565 = vand.u32 %v64, 4294901760
    %566 = vmatmul.f32.gmra.mxu0 %v565
    %v567 = vpop.f32.mrf.mxu0
    %v568 = vadd.f32 %v461, %v567
    %v569 = vand.u32 %v67, 4294901760
    %570 = vmatmul.f32.gmra.mxu0 %v569
    %v571 = vpop.f32.mrf.mxu0
    %v572 = vadd.f32 %v467, %v571
    %v573 = vand.u32 %v70, 4294901760
    %574 = vmatmul.f32.gmra.mxu0 %v573
    %v575 = vpop.f32.mrf.mxu0
    %v576 = vadd.f32 %v473, %v575
    %v577 = vand.u32 %v73, 4294901760
    %578 = vmatmul.f32.gmra.mxu0 %v577
    %v579 = vpop.f32.mrf.mxu0
    %v580 = vadd.f32 %v479, %v579
    %v581 = vand.u32 %v76, 4294901760
    %582 = vmatmul.f32.gmra.mxu0 %v581
    %v583 = vpop.f32.mrf.mxu0
    %v584 = vadd.f32 %v485, %v583
    %v585 = vand.u32 %v79, 4294901760
    %586 = vmatmul.f32.gmra.mxu0 %v585
    %v587 = vpop.f32.mrf.mxu0
    %v588 = vadd.f32 %v491, %v587
    %v589 = vand.u32 %v82, 4294901760
    %590 = vmatmul.f32.gmra.mxu0 %v589
    %v591 = vpop.f32.mrf.mxu0
    %v592 = vadd.f32 %v497, %v591
    %v593 = vand.u32 %v85, 4294901760
    %594 = vmatmul.f32.gmra.mxu0 %v593
    %v595 = vpop.f32.mrf.mxu0
    %v596 = vadd.f32 %v503, %v595
    %v597 = vand.u32 %v88, 4294901760
    %598 = vmatmul.f32.gmra.mxu0 %v597
    %v599 = vpop.f32.mrf.mxu0
    %v600 = vadd.f32 %v509, %v599
    %v601 = vand.u32 %v91, 4294901760
    %602 = vmatmul.f32.gmra.mxu0 %v601
    %v603 = vpop.f32.mrf.mxu0
    %v604 = vadd.f32 %v515, %v603
    %v605 = vand.u32 %v94, 4294901760
    %606 = vmatmul.f32.gmra.mxu0 %v605
    %v607 = vpop.f32.mrf.mxu0
    %v608 = vadd.f32 %v521, %v607
    %v609 = vand.u32 %v97, 4294901760
    %610 = vmatmul.f32.gmra.mxu0 %v609
    %v611 = vpop.f32.mrf.mxu0
    %v612 = vadd.f32 %v527, %v611
    %v613 = vand.u32 %v100, 4294901760
    %614 = vmatmul.f32.gmra.mxu0 %v613
    %v615 = vpop.f32.mrf.mxu0
    %v616 = vadd.f32 %v533, %v615
    %v617 = vand.u32 %v103, 4294901760
    %618 = vmatmul.f32.gmra.mxu0 %v617
    %v619 = vpop.f32.mrf.mxu0
    %v620 = vadd.f32 %v539, %v619
    %621 = vdwg.mxu0
    %622 = vmatpush.msra.mxu0 0.0
    %623 = vmatpush.msra.mxu0 0.0
    %624 = vmatpush.msra.mxu0 0.0
    %625 = vmatpush.msra.mxu0 0.0
    %626 = vmatpush.msra.mxu0 0.0
    %627 = vmatpush.msra.mxu0 0.0
    %628 = vmatpush.msra.mxu0 0.0
    %629 = vmatpush.msra.mxu0 0.0
    %630 = vmatpush.msra.mxu0 0.0
    %631 = vmatpush.msra.mxu0 0.0
    %632 = vmatpush.msra.mxu0 0.0
    %633 = vmatpush.msra.mxu0 0.0
    %634 = vmatpush.msra.mxu0 1.0
    %635 = vmatpush.msra.mxu0 1.0
    %636 = vmatpush.msra.mxu0 1.0
    %637 = vmatpush.msra.mxu0 1.0
    %v638 = vand.u32 %v58, 4294901760
    %639 = vmatmul.f32.gmra.mxu0 %v638
    %v640 = vpop.f32.mrf.mxu0
    %v641 = vadd.f32 %v560, %v640
    %v642 = vand.u32 %v61, 4294901760
    %643 = vmatmul.f32.gmra.mxu0 %v642
    %v644 = vpop.f32.mrf.mxu0
    %v645 = vadd.f32 %v564, %v644
    %v646 = vand.u32 %v64, 4294901760
    %647 = vmatmul.f32.gmra.mxu0 %v646
    %v648 = vpop.f32.mrf.mxu0
    %v649 = vadd.f32 %v568, %v648
    %v650 = vand.u32 %v67, 4294901760
    %651 = vmatmul.f32.gmra.mxu0 %v650
    %v652 = vpop.f32.mrf.mxu0
    %v653 = vadd.f32 %v572, %v652
    %v654 = vand.u32 %v70, 4294901760
    %655 = vmatmul.f32.gmra.mxu0 %v654
    %v656 = vpop.f32.mrf.mxu0
    %v657 = vadd.f32 %v576, %v656
    %v658 = vand.u32 %v73, 4294901760
    %659 = vmatmul.f32.gmra.mxu0 %v658
    %v660 = vpop.f32.mrf.mxu0
    %v661 = vadd.f32 %v580, %v660
    %v662 = vand.u32 %v76, 4294901760
    %663 = vmatmul.f32.gmra.mxu0 %v662
    %v664 = vpop.f32.mrf.mxu0
    %v665 = vadd.f32 %v584, %v664
    %v666 = vand.u32 %v79, 4294901760
    %667 = vmatmul.f32.gmra.mxu0 %v666
    %v668 = vpop.f32.mrf.mxu0
    %v669 = vadd.f32 %v588, %v668
    %v670 = vand.u32 %v82, 4294901760
    %671 = vmatmul.f32.gmra.mxu0 %v670
    %v672 = vpop.f32.mrf.mxu0
    %v673 = vadd.f32 %v592, %v672
    %v674 = vand.u32 %v85, 4294901760
    %675 = vmatmul.f32.gmra.mxu0 %v674
    %v676 = vpop.f32.mrf.mxu0
    %v677 = vadd.f32 %v596, %v676
    %v678 = vand.u32 %v88, 4294901760
    %679 = vmatmul.f32.gmra.mxu0 %v678
    %v680 = vpop.f32.mrf.mxu0
    %v681 = vadd.f32 %v600, %v680
    %v682 = vand.u32 %v91, 4294901760
    %683 = vmatmul.f32.gmra.mxu0 %v682
    %v684 = vpop.f32.mrf.mxu0
    %v685 = vadd.f32 %v604, %v684
    %v686 = vand.u32 %v94, 4294901760
    %687 = vmatmul.f32.gmra.mxu0 %v686
    %v688 = vpop.f32.mrf.mxu0
    %v689 = vadd.f32 %v608, %v688
    %v690 = vand.u32 %v97, 4294901760
    %691 = vmatmul.f32.gmra.mxu0 %v690
    %v692 = vpop.f32.mrf.mxu0
    %v693 = vadd.f32 %v612, %v692
    %v694 = vand.u32 %v100, 4294901760
    %695 = vmatmul.f32.gmra.mxu0 %v694
    %v696 = vpop.f32.mrf.mxu0
    %v697 = vadd.f32 %v616, %v696
    %v698 = vand.u32 %v103, 4294901760
    %699 = vmatmul.f32.gmra.mxu0 %v698
    %v700 = vpop.f32.mrf.mxu0
    %v701 = vadd.f32 %v620, %v700
    %702 = vdwg.mxu0
    %v704 = vsel %vm56, %v40, 0
    %v707 = vsel %vm56, %v41, 0
    %v710 = vsel %vm56, %v42, 0
    %v713 = vsel %vm56, %v43, 0
    %v716 = vsel %vm56, %v44, 0
    %v719 = vsel %vm56, %v45, 0
    %v722 = vsel %vm56, %v46, 0
    %v725 = vsel %vm56, %v47, 0
    %v728 = vsel %vm56, %v48, 0
    %v731 = vsel %vm56, %v49, 0
    %v734 = vsel %vm56, %v50, 0
    %v737 = vsel %vm56, %v51, 0
    %v740 = vsel %vm56, %v52, 0
    %v743 = vsel %vm56, %v53, 0
    %v746 = vsel %vm56, %v54, 0
    %v749 = vsel %vm56, %v55, 0
    %751 = vmatpush.msra.mxu0 0.0
    %752 = vmatpush.msra.mxu0 0.0
    %753 = vmatpush.msra.mxu0 0.0
    %754 = vmatpush.msra.mxu0 0.0
    %755 = vmatpush.msra.mxu0 0.0
    %756 = vmatpush.msra.mxu0 0.0
    %757 = vmatpush.msra.mxu0 0.0
    %758 = vmatpush.msra.mxu0 0.0
    %759 = vmatpush.msra.mxu0 0.0
    %760 = vmatpush.msra.mxu0 0.0
    %761 = vmatpush.msra.mxu0 0.0
    %762 = vmatpush.msra.mxu0 0.0
    %763 = vmatpush.msra.mxu0 1.0
    %764 = vmatpush.msra.mxu0 1.0
    %765 = vmatpush.msra.mxu0 1.0
    %766 = vmatpush.msra.mxu0 1.0
    %v767 = vand.u32 %v704, 4294901760
    %v768 = vsub.f32 %v704, %v767
    %v769 = vand.u32 %v768, 4294901760
    %v770 = vsub.f32 %v768, %v769
    %v771 = vand.u32 %v770, 4294901760
    %772 = vmatmul.f32.gmra.mxu0 %v771
    %v773 = vpop.f32.mrf.mxu0
    %v774 = vadd.f32 0.0, %v773
    %v775 = vand.u32 %v707, 4294901760
    %v776 = vsub.f32 %v707, %v775
    %v777 = vand.u32 %v776, 4294901760
    %v778 = vsub.f32 %v776, %v777
    %v779 = vand.u32 %v778, 4294901760
    %780 = vmatmul.f32.gmra.mxu0 %v779
    %v781 = vpop.f32.mrf.mxu0
    %v782 = vadd.f32 0.0, %v781
    %v783 = vand.u32 %v710, 4294901760
    %v784 = vsub.f32 %v710, %v783
    %v785 = vand.u32 %v784, 4294901760
    %v786 = vsub.f32 %v784, %v785
    %v787 = vand.u32 %v786, 4294901760
    %788 = vmatmul.f32.gmra.mxu0 %v787
    %v789 = vpop.f32.mrf.mxu0
    %v790 = vadd.f32 0.0, %v789
    %v791 = vand.u32 %v713, 4294901760
    %v792 = vsub.f32 %v713, %v791
    %v793 = vand.u32 %v792, 4294901760
    %v794 = vsub.f32 %v792, %v793
    %v795 = vand.u32 %v794, 4294901760
    %796 = vmatmul.f32.gmra.mxu0 %v795
    %v797 = vpop.f32.mrf.mxu0
    %v798 = vadd.f32 0.0, %v797
    %v799 = vand.u32 %v716, 4294901760
    %v800 = vsub.f32 %v716, %v799
    %v801 = vand.u32 %v800, 4294901760
    %v802 = vsub.f32 %v800, %v801
    %v803 = vand.u32 %v802, 4294901760
    %804 = vmatmul.f32.gmra.mxu0 %v803
    %v805 = vpop.f32.mrf.mxu0
    %v806 = vadd.f32 0.0, %v805
    %v807 = vand.u32 %v719, 4294901760
    %v808 = vsub.f32 %v719, %v807
    %v809 = vand.u32 %v808, 4294901760
    %v810 = vsub.f32 %v808, %v809
    %v811 = vand.u32 %v810, 4294901760
    %812 = vmatmul.f32.gmra.mxu0 %v811
    %v813 = vpop.f32.mrf.mxu0
    %v814 = vadd.f32 0.0, %v813
    %v815 = vand.u32 %v722, 4294901760
    %v816 = vsub.f32 %v722, %v815
    %v817 = vand.u32 %v816, 4294901760
    %v818 = vsub.f32 %v816, %v817
    %v819 = vand.u32 %v818, 4294901760
    %820 = vmatmul.f32.gmra.mxu0 %v819
    %v821 = vpop.f32.mrf.mxu0
    %v822 = vadd.f32 0.0, %v821
    %v823 = vand.u32 %v725, 4294901760
    %v824 = vsub.f32 %v725, %v823
    %v825 = vand.u32 %v824, 4294901760
    %v826 = vsub.f32 %v824, %v825
    %v827 = vand.u32 %v826, 4294901760
    %828 = vmatmul.f32.gmra.mxu0 %v827
    %v829 = vpop.f32.mrf.mxu0
    %v830 = vadd.f32 0.0, %v829
    %v831 = vand.u32 %v728, 4294901760
    %v832 = vsub.f32 %v728, %v831
    %v833 = vand.u32 %v832, 4294901760
    %v834 = vsub.f32 %v832, %v833
    %v835 = vand.u32 %v834, 4294901760
    %836 = vmatmul.f32.gmra.mxu0 %v835
    %v837 = vpop.f32.mrf.mxu0
    %v838 = vadd.f32 0.0, %v837
    %v839 = vand.u32 %v731, 4294901760
    %v840 = vsub.f32 %v731, %v839
    %v841 = vand.u32 %v840, 4294901760
    %v842 = vsub.f32 %v840, %v841
    %v843 = vand.u32 %v842, 4294901760
    %844 = vmatmul.f32.gmra.mxu0 %v843
    %v845 = vpop.f32.mrf.mxu0
    %v846 = vadd.f32 0.0, %v845
    %v847 = vand.u32 %v734, 4294901760
    %v848 = vsub.f32 %v734, %v847
    %v849 = vand.u32 %v848, 4294901760
    %v850 = vsub.f32 %v848, %v849
    %v851 = vand.u32 %v850, 4294901760
    %852 = vmatmul.f32.gmra.mxu0 %v851
    %v853 = vpop.f32.mrf.mxu0
    %v854 = vadd.f32 0.0, %v853
    %v855 = vand.u32 %v737, 4294901760
    %v856 = vsub.f32 %v737, %v855
    %v857 = vand.u32 %v856, 4294901760
    %v858 = vsub.f32 %v856, %v857
    %v859 = vand.u32 %v858, 4294901760
    %860 = vmatmul.f32.gmra.mxu0 %v859
    %v861 = vpop.f32.mrf.mxu0
    %v862 = vadd.f32 0.0, %v861
    %v863 = vand.u32 %v740, 4294901760
    %v864 = vsub.f32 %v740, %v863
    %v865 = vand.u32 %v864, 4294901760
    %v866 = vsub.f32 %v864, %v865
    %v867 = vand.u32 %v866, 4294901760
    %868 = vmatmul.f32.gmra.mxu0 %v867
    %v869 = vpop.f32.mrf.mxu0
    %v870 = vadd.f32 0.0, %v869
    %v871 = vand.u32 %v743, 4294901760
    %v872 = vsub.f32 %v743, %v871
    %v873 = vand.u32 %v872, 4294901760
    %v874 = vsub.f32 %v872, %v873
    %v875 = vand.u32 %v874, 4294901760
    %876 = vmatmul.f32.gmra.mxu0 %v875
    %v877 = vpop.f32.mrf.mxu0
    %v878 = vadd.f32 0.0, %v877
    %v879 = vand.u32 %v746, 4294901760
    %v880 = vsub.f32 %v746, %v879
    %v881 = vand.u32 %v880, 4294901760
    %v882 = vsub.f32 %v880, %v881
    %v883 = vand.u32 %v882, 4294901760
    %884 = vmatmul.f32.gmra.mxu0 %v883
    %v885 = vpop.f32.mrf.mxu0
    %v886 = vadd.f32 0.0, %v885
    %v887 = vand.u32 %v749, 4294901760
    %v888 = vsub.f32 %v749, %v887
    %v889 = vand.u32 %v888, 4294901760
    %v890 = vsub.f32 %v888, %v889
    %v891 = vand.u32 %v890, 4294901760
    %892 = vmatmul.f32.gmra.mxu0 %v891
    %v893 = vpop.f32.mrf.mxu0
    %v894 = vadd.f32 0.0, %v893
    %895 = vdwg.mxu0
    %896 = vmatpush.msra.mxu0 0.0
    %897 = vmatpush.msra.mxu0 0.0
    %898 = vmatpush.msra.mxu0 0.0
    %899 = vmatpush.msra.mxu0 0.0
    %900 = vmatpush.msra.mxu0 0.0
    %901 = vmatpush.msra.mxu0 0.0
    %902 = vmatpush.msra.mxu0 0.0
    %903 = vmatpush.msra.mxu0 0.0
    %904 = vmatpush.msra.mxu0 0.0
    %905 = vmatpush.msra.mxu0 0.0
    %906 = vmatpush.msra.mxu0 0.0
    %907 = vmatpush.msra.mxu0 0.0
    %908 = vmatpush.msra.mxu0 0.0
    %909 = vmatpush.msra.mxu0 0.0
    %910 = vmatpush.msra.mxu0 0.0
    %911 = vmatpush.msra.mxu0 0.0
    %v912 = vand.u32 %v704, 4294901760
    %913 = vmatmul.f32.gmra.mxu0 %v912
    %v914 = vpop.f32.mrf.mxu0
    %v915 = vadd.f32 %v774, %v914
    %v916 = vand.u32 %v707, 4294901760
    %917 = vmatmul.f32.gmra.mxu0 %v916
    %v918 = vpop.f32.mrf.mxu0
    %v919 = vadd.f32 %v782, %v918
    %v920 = vand.u32 %v710, 4294901760
    %921 = vmatmul.f32.gmra.mxu0 %v920
    %v922 = vpop.f32.mrf.mxu0
    %v923 = vadd.f32 %v790, %v922
    %v924 = vand.u32 %v713, 4294901760
    %925 = vmatmul.f32.gmra.mxu0 %v924
    %v926 = vpop.f32.mrf.mxu0
    %v927 = vadd.f32 %v798, %v926
    %v928 = vand.u32 %v716, 4294901760
    %929 = vmatmul.f32.gmra.mxu0 %v928
    %v930 = vpop.f32.mrf.mxu0
    %v931 = vadd.f32 %v806, %v930
    %v932 = vand.u32 %v719, 4294901760
    %933 = vmatmul.f32.gmra.mxu0 %v932
    %v934 = vpop.f32.mrf.mxu0
    %v935 = vadd.f32 %v814, %v934
    %v936 = vand.u32 %v722, 4294901760
    %937 = vmatmul.f32.gmra.mxu0 %v936
    %v938 = vpop.f32.mrf.mxu0
    %v939 = vadd.f32 %v822, %v938
    %v940 = vand.u32 %v725, 4294901760
    %941 = vmatmul.f32.gmra.mxu0 %v940
    %v942 = vpop.f32.mrf.mxu0
    %v943 = vadd.f32 %v830, %v942
    %v944 = vand.u32 %v728, 4294901760
    %945 = vmatmul.f32.gmra.mxu0 %v944
    %v946 = vpop.f32.mrf.mxu0
    %v947 = vadd.f32 %v838, %v946
    %v948 = vand.u32 %v731, 4294901760
    %949 = vmatmul.f32.gmra.mxu0 %v948
    %v950 = vpop.f32.mrf.mxu0
    %v951 = vadd.f32 %v846, %v950
    %v952 = vand.u32 %v734, 4294901760
    %953 = vmatmul.f32.gmra.mxu0 %v952
    %v954 = vpop.f32.mrf.mxu0
    %v955 = vadd.f32 %v854, %v954
    %v956 = vand.u32 %v737, 4294901760
    %957 = vmatmul.f32.gmra.mxu0 %v956
    %v958 = vpop.f32.mrf.mxu0
    %v959 = vadd.f32 %v862, %v958
    %v960 = vand.u32 %v740, 4294901760
    %961 = vmatmul.f32.gmra.mxu0 %v960
    %v962 = vpop.f32.mrf.mxu0
    %v963 = vadd.f32 %v870, %v962
    %v964 = vand.u32 %v743, 4294901760
    %965 = vmatmul.f32.gmra.mxu0 %v964
    %v966 = vpop.f32.mrf.mxu0
    %v967 = vadd.f32 %v878, %v966
    %v968 = vand.u32 %v746, 4294901760
    %969 = vmatmul.f32.gmra.mxu0 %v968
    %v970 = vpop.f32.mrf.mxu0
    %v971 = vadd.f32 %v886, %v970
    %v972 = vand.u32 %v749, 4294901760
    %973 = vmatmul.f32.gmra.mxu0 %v972
    %v974 = vpop.f32.mrf.mxu0
    %v975 = vadd.f32 %v894, %v974
    %976 = vdwg.mxu0
    %977 = vmatpush.msra.mxu0 0.0
    %978 = vmatpush.msra.mxu0 0.0
    %979 = vmatpush.msra.mxu0 0.0
    %980 = vmatpush.msra.mxu0 0.0
    %981 = vmatpush.msra.mxu0 0.0
    %982 = vmatpush.msra.mxu0 0.0
    %983 = vmatpush.msra.mxu0 0.0
    %984 = vmatpush.msra.mxu0 0.0
    %985 = vmatpush.msra.mxu0 0.0
    %986 = vmatpush.msra.mxu0 0.0
    %987 = vmatpush.msra.mxu0 0.0
    %988 = vmatpush.msra.mxu0 0.0
    %989 = vmatpush.msra.mxu0 0.0
    %990 = vmatpush.msra.mxu0 0.0
    %991 = vmatpush.msra.mxu0 0.0
    %992 = vmatpush.msra.mxu0 0.0
    %v993 = vand.u32 %v704, 4294901760
    %v994 = vsub.f32 %v704, %v993
    %995 = vmatmul.f32.gmra.mxu0 %v994
    %v996 = vpop.f32.mrf.mxu0
    %v997 = vadd.f32 %v915, %v996
    %v998 = vand.u32 %v707, 4294901760
    %v999 = vsub.f32 %v707, %v998
    %1000 = vmatmul.f32.gmra.mxu0 %v999
    %v1001 = vpop.f32.mrf.mxu0
    %v1002 = vadd.f32 %v919, %v1001
    %v1003 = vand.u32 %v710, 4294901760
    %v1004 = vsub.f32 %v710, %v1003
    %1005 = vmatmul.f32.gmra.mxu0 %v1004
    %v1006 = vpop.f32.mrf.mxu0
    %v1007 = vadd.f32 %v923, %v1006
    %v1008 = vand.u32 %v713, 4294901760
    %v1009 = vsub.f32 %v713, %v1008
    %1010 = vmatmul.f32.gmra.mxu0 %v1009
    %v1011 = vpop.f32.mrf.mxu0
    %v1012 = vadd.f32 %v927, %v1011
    %v1013 = vand.u32 %v716, 4294901760
    %v1014 = vsub.f32 %v716, %v1013
    %1015 = vmatmul.f32.gmra.mxu0 %v1014
    %v1016 = vpop.f32.mrf.mxu0
    %v1017 = vadd.f32 %v931, %v1016
    %v1018 = vand.u32 %v719, 4294901760
    %v1019 = vsub.f32 %v719, %v1018
    %1020 = vmatmul.f32.gmra.mxu0 %v1019
    %v1021 = vpop.f32.mrf.mxu0
    %v1022 = vadd.f32 %v935, %v1021
    %v1023 = vand.u32 %v722, 4294901760
    %v1024 = vsub.f32 %v722, %v1023
    %1025 = vmatmul.f32.gmra.mxu0 %v1024
    %v1026 = vpop.f32.mrf.mxu0
    %v1027 = vadd.f32 %v939, %v1026
    %v1028 = vand.u32 %v725, 4294901760
    %v1029 = vsub.f32 %v725, %v1028
    %1030 = vmatmul.f32.gmra.mxu0 %v1029
    %v1031 = vpop.f32.mrf.mxu0
    %v1032 = vadd.f32 %v943, %v1031
    %v1033 = vand.u32 %v728, 4294901760
    %v1034 = vsub.f32 %v728, %v1033
    %1035 = vmatmul.f32.gmra.mxu0 %v1034
    %v1036 = vpop.f32.mrf.mxu0
    %v1037 = vadd.f32 %v947, %v1036
    %v1038 = vand.u32 %v731, 4294901760
    %v1039 = vsub.f32 %v731, %v1038
    %1040 = vmatmul.f32.gmra.mxu0 %v1039
    %v1041 = vpop.f32.mrf.mxu0
    %v1042 = vadd.f32 %v951, %v1041
    %v1043 = vand.u32 %v734, 4294901760
    %v1044 = vsub.f32 %v734, %v1043
    %1045 = vmatmul.f32.gmra.mxu0 %v1044
    %v1046 = vpop.f32.mrf.mxu0
    %v1047 = vadd.f32 %v955, %v1046
    %v1048 = vand.u32 %v737, 4294901760
    %v1049 = vsub.f32 %v737, %v1048
    %1050 = vmatmul.f32.gmra.mxu0 %v1049
    %v1051 = vpop.f32.mrf.mxu0
    %v1052 = vadd.f32 %v959, %v1051
    %v1053 = vand.u32 %v740, 4294901760
    %v1054 = vsub.f32 %v740, %v1053
    %1055 = vmatmul.f32.gmra.mxu0 %v1054
    %v1056 = vpop.f32.mrf.mxu0
    %v1057 = vadd.f32 %v963, %v1056
    %v1058 = vand.u32 %v743, 4294901760
    %v1059 = vsub.f32 %v743, %v1058
    %1060 = vmatmul.f32.gmra.mxu0 %v1059
    %v1061 = vpop.f32.mrf.mxu0
    %v1062 = vadd.f32 %v967, %v1061
    %v1063 = vand.u32 %v746, 4294901760
    %v1064 = vsub.f32 %v746, %v1063
    %1065 = vmatmul.f32.gmra.mxu0 %v1064
    %v1066 = vpop.f32.mrf.mxu0
    %v1067 = vadd.f32 %v971, %v1066
    %v1068 = vand.u32 %v749, 4294901760
    %v1069 = vsub.f32 %v749, %v1068
    %1070 = vmatmul.f32.gmra.mxu0 %v1069
    %v1071 = vpop.f32.mrf.mxu0
    %v1072 = vadd.f32 %v975, %v1071
    %1073 = vdwg.mxu0
    %1074 = vmatpush.msra.mxu0 0.0
    %1075 = vmatpush.msra.mxu0 0.0
    %1076 = vmatpush.msra.mxu0 0.0
    %1077 = vmatpush.msra.mxu0 0.0
    %1078 = vmatpush.msra.mxu0 0.0
    %1079 = vmatpush.msra.mxu0 0.0
    %1080 = vmatpush.msra.mxu0 0.0
    %1081 = vmatpush.msra.mxu0 0.0
    %1082 = vmatpush.msra.mxu0 0.0
    %1083 = vmatpush.msra.mxu0 0.0
    %1084 = vmatpush.msra.mxu0 0.0
    %1085 = vmatpush.msra.mxu0 0.0
    %1086 = vmatpush.msra.mxu0 1.0
    %1087 = vmatpush.msra.mxu0 1.0
    %1088 = vmatpush.msra.mxu0 1.0
    %1089 = vmatpush.msra.mxu0 1.0
    %v1090 = vand.u32 %v704, 4294901760
    %v1091 = vsub.f32 %v704, %v1090
    %v1092 = vand.u32 %v1091, 4294901760
    %1093 = vmatmul.f32.gmra.mxu0 %v1092
    %v1094 = vpop.f32.mrf.mxu0
    %v1095 = vadd.f32 %v997, %v1094
    %v1096 = vand.u32 %v707, 4294901760
    %v1097 = vsub.f32 %v707, %v1096
    %v1098 = vand.u32 %v1097, 4294901760
    %1099 = vmatmul.f32.gmra.mxu0 %v1098
    %v1100 = vpop.f32.mrf.mxu0
    %v1101 = vadd.f32 %v1002, %v1100
    %v1102 = vand.u32 %v710, 4294901760
    %v1103 = vsub.f32 %v710, %v1102
    %v1104 = vand.u32 %v1103, 4294901760
    %1105 = vmatmul.f32.gmra.mxu0 %v1104
    %v1106 = vpop.f32.mrf.mxu0
    %v1107 = vadd.f32 %v1007, %v1106
    %v1108 = vand.u32 %v713, 4294901760
    %v1109 = vsub.f32 %v713, %v1108
    %v1110 = vand.u32 %v1109, 4294901760
    %1111 = vmatmul.f32.gmra.mxu0 %v1110
    %v1112 = vpop.f32.mrf.mxu0
    %v1113 = vadd.f32 %v1012, %v1112
    %v1114 = vand.u32 %v716, 4294901760
    %v1115 = vsub.f32 %v716, %v1114
    %v1116 = vand.u32 %v1115, 4294901760
    %1117 = vmatmul.f32.gmra.mxu0 %v1116
    %v1118 = vpop.f32.mrf.mxu0
    %v1119 = vadd.f32 %v1017, %v1118
    %v1120 = vand.u32 %v719, 4294901760
    %v1121 = vsub.f32 %v719, %v1120
    %v1122 = vand.u32 %v1121, 4294901760
    %1123 = vmatmul.f32.gmra.mxu0 %v1122
    %v1124 = vpop.f32.mrf.mxu0
    %v1125 = vadd.f32 %v1022, %v1124
    %v1126 = vand.u32 %v722, 4294901760
    %v1127 = vsub.f32 %v722, %v1126
    %v1128 = vand.u32 %v1127, 4294901760
    %1129 = vmatmul.f32.gmra.mxu0 %v1128
    %v1130 = vpop.f32.mrf.mxu0
    %v1131 = vadd.f32 %v1027, %v1130
    %v1132 = vand.u32 %v725, 4294901760
    %v1133 = vsub.f32 %v725, %v1132
    %v1134 = vand.u32 %v1133, 4294901760
    %1135 = vmatmul.f32.gmra.mxu0 %v1134
    %v1136 = vpop.f32.mrf.mxu0
    %v1137 = vadd.f32 %v1032, %v1136
    %v1138 = vand.u32 %v728, 4294901760
    %v1139 = vsub.f32 %v728, %v1138
    %v1140 = vand.u32 %v1139, 4294901760
    %1141 = vmatmul.f32.gmra.mxu0 %v1140
    %v1142 = vpop.f32.mrf.mxu0
    %v1143 = vadd.f32 %v1037, %v1142
    %v1144 = vand.u32 %v731, 4294901760
    %v1145 = vsub.f32 %v731, %v1144
    %v1146 = vand.u32 %v1145, 4294901760
    %1147 = vmatmul.f32.gmra.mxu0 %v1146
    %v1148 = vpop.f32.mrf.mxu0
    %v1149 = vadd.f32 %v1042, %v1148
    %v1150 = vand.u32 %v734, 4294901760
    %v1151 = vsub.f32 %v734, %v1150
    %v1152 = vand.u32 %v1151, 4294901760
    %1153 = vmatmul.f32.gmra.mxu0 %v1152
    %v1154 = vpop.f32.mrf.mxu0
    %v1155 = vadd.f32 %v1047, %v1154
    %v1156 = vand.u32 %v737, 4294901760
    %v1157 = vsub.f32 %v737, %v1156
    %v1158 = vand.u32 %v1157, 4294901760
    %1159 = vmatmul.f32.gmra.mxu0 %v1158
    %v1160 = vpop.f32.mrf.mxu0
    %v1161 = vadd.f32 %v1052, %v1160
    %v1162 = vand.u32 %v740, 4294901760
    %v1163 = vsub.f32 %v740, %v1162
    %v1164 = vand.u32 %v1163, 4294901760
    %1165 = vmatmul.f32.gmra.mxu0 %v1164
    %v1166 = vpop.f32.mrf.mxu0
    %v1167 = vadd.f32 %v1057, %v1166
    %v1168 = vand.u32 %v743, 4294901760
    %v1169 = vsub.f32 %v743, %v1168
    %v1170 = vand.u32 %v1169, 4294901760
    %1171 = vmatmul.f32.gmra.mxu0 %v1170
    %v1172 = vpop.f32.mrf.mxu0
    %v1173 = vadd.f32 %v1062, %v1172
    %v1174 = vand.u32 %v746, 4294901760
    %v1175 = vsub.f32 %v746, %v1174
    %v1176 = vand.u32 %v1175, 4294901760
    %1177 = vmatmul.f32.gmra.mxu0 %v1176
    %v1178 = vpop.f32.mrf.mxu0
    %v1179 = vadd.f32 %v1067, %v1178
    %v1180 = vand.u32 %v749, 4294901760
    %v1181 = vsub.f32 %v749, %v1180
    %v1182 = vand.u32 %v1181, 4294901760
    %1183 = vmatmul.f32.gmra.mxu0 %v1182
    %v1184 = vpop.f32.mrf.mxu0
    %v1185 = vadd.f32 %v1072, %v1184
    %1186 = vdwg.mxu0
    %1187 = vmatpush.msra.mxu0 0.0
    %1188 = vmatpush.msra.mxu0 0.0
    %1189 = vmatpush.msra.mxu0 0.0
    %1190 = vmatpush.msra.mxu0 0.0
    %1191 = vmatpush.msra.mxu0 0.0
    %1192 = vmatpush.msra.mxu0 0.0
    %1193 = vmatpush.msra.mxu0 0.0
    %1194 = vmatpush.msra.mxu0 0.0
    %1195 = vmatpush.msra.mxu0 0.0
    %1196 = vmatpush.msra.mxu0 0.0
    %1197 = vmatpush.msra.mxu0 0.0
    %1198 = vmatpush.msra.mxu0 0.0
    %1199 = vmatpush.msra.mxu0 0.0
    %1200 = vmatpush.msra.mxu0 0.0
    %1201 = vmatpush.msra.mxu0 0.0
    %1202 = vmatpush.msra.mxu0 0.0
    %v1203 = vand.u32 %v704, 4294901760
    %1204 = vmatmul.f32.gmra.mxu0 %v1203
    %v1205 = vpop.f32.mrf.mxu0
    %v1206 = vadd.f32 %v1095, %v1205
    %v1207 = vand.u32 %v707, 4294901760
    %1208 = vmatmul.f32.gmra.mxu0 %v1207
    %v1209 = vpop.f32.mrf.mxu0
    %v1210 = vadd.f32 %v1101, %v1209
    %v1211 = vand.u32 %v710, 4294901760
    %1212 = vmatmul.f32.gmra.mxu0 %v1211
    %v1213 = vpop.f32.mrf.mxu0
    %v1214 = vadd.f32 %v1107, %v1213
    %v1215 = vand.u32 %v713, 4294901760
    %1216 = vmatmul.f32.gmra.mxu0 %v1215
    %v1217 = vpop.f32.mrf.mxu0
    %v1218 = vadd.f32 %v1113, %v1217
    %v1219 = vand.u32 %v716, 4294901760
    %1220 = vmatmul.f32.gmra.mxu0 %v1219
    %v1221 = vpop.f32.mrf.mxu0
    %v1222 = vadd.f32 %v1119, %v1221
    %v1223 = vand.u32 %v719, 4294901760
    %1224 = vmatmul.f32.gmra.mxu0 %v1223
    %v1225 = vpop.f32.mrf.mxu0
    %v1226 = vadd.f32 %v1125, %v1225
    %v1227 = vand.u32 %v722, 4294901760
    %1228 = vmatmul.f32.gmra.mxu0 %v1227
    %v1229 = vpop.f32.mrf.mxu0
    %v1230 = vadd.f32 %v1131, %v1229
    %v1231 = vand.u32 %v725, 4294901760
    %1232 = vmatmul.f32.gmra.mxu0 %v1231
    %v1233 = vpop.f32.mrf.mxu0
    %v1234 = vadd.f32 %v1137, %v1233
    %v1235 = vand.u32 %v728, 4294901760
    %1236 = vmatmul.f32.gmra.mxu0 %v1235
    %v1237 = vpop.f32.mrf.mxu0
    %v1238 = vadd.f32 %v1143, %v1237
    %v1239 = vand.u32 %v731, 4294901760
    %1240 = vmatmul.f32.gmra.mxu0 %v1239
    %v1241 = vpop.f32.mrf.mxu0
    %v1242 = vadd.f32 %v1149, %v1241
    %v1243 = vand.u32 %v734, 4294901760
    %1244 = vmatmul.f32.gmra.mxu0 %v1243
    %v1245 = vpop.f32.mrf.mxu0
    %v1246 = vadd.f32 %v1155, %v1245
    %v1247 = vand.u32 %v737, 4294901760
    %1248 = vmatmul.f32.gmra.mxu0 %v1247
    %v1249 = vpop.f32.mrf.mxu0
    %v1250 = vadd.f32 %v1161, %v1249
    %v1251 = vand.u32 %v740, 4294901760
    %1252 = vmatmul.f32.gmra.mxu0 %v1251
    %v1253 = vpop.f32.mrf.mxu0
    %v1254 = vadd.f32 %v1167, %v1253
    %v1255 = vand.u32 %v743, 4294901760
    %1256 = vmatmul.f32.gmra.mxu0 %v1255
    %v1257 = vpop.f32.mrf.mxu0
    %v1258 = vadd.f32 %v1173, %v1257
    %v1259 = vand.u32 %v746, 4294901760
    %1260 = vmatmul.f32.gmra.mxu0 %v1259
    %v1261 = vpop.f32.mrf.mxu0
    %v1262 = vadd.f32 %v1179, %v1261
    %v1263 = vand.u32 %v749, 4294901760
    %1264 = vmatmul.f32.gmra.mxu0 %v1263
    %v1265 = vpop.f32.mrf.mxu0
    %v1266 = vadd.f32 %v1185, %v1265
    %1267 = vdwg.mxu0
    %1268 = vmatpush.msra.mxu0 0.0
    %1269 = vmatpush.msra.mxu0 0.0
    %1270 = vmatpush.msra.mxu0 0.0
    %1271 = vmatpush.msra.mxu0 0.0
    %1272 = vmatpush.msra.mxu0 0.0
    %1273 = vmatpush.msra.mxu0 0.0
    %1274 = vmatpush.msra.mxu0 0.0
    %1275 = vmatpush.msra.mxu0 0.0
    %1276 = vmatpush.msra.mxu0 0.0
    %1277 = vmatpush.msra.mxu0 0.0
    %1278 = vmatpush.msra.mxu0 0.0
    %1279 = vmatpush.msra.mxu0 0.0
    %1280 = vmatpush.msra.mxu0 1.0
    %1281 = vmatpush.msra.mxu0 1.0
    %1282 = vmatpush.msra.mxu0 1.0
    %1283 = vmatpush.msra.mxu0 1.0
    %v1284 = vand.u32 %v704, 4294901760
    %1285 = vmatmul.f32.gmra.mxu0 %v1284
    %v1286 = vpop.f32.mrf.mxu0
    %v1287 = vadd.f32 %v1206, %v1286
    %v1288 = vand.u32 %v707, 4294901760
    %1289 = vmatmul.f32.gmra.mxu0 %v1288
    %v1290 = vpop.f32.mrf.mxu0
    %v1291 = vadd.f32 %v1210, %v1290
    %v1292 = vand.u32 %v710, 4294901760
    %1293 = vmatmul.f32.gmra.mxu0 %v1292
    %v1294 = vpop.f32.mrf.mxu0
    %v1295 = vadd.f32 %v1214, %v1294
    %v1296 = vand.u32 %v713, 4294901760
    %1297 = vmatmul.f32.gmra.mxu0 %v1296
    %v1298 = vpop.f32.mrf.mxu0
    %v1299 = vadd.f32 %v1218, %v1298
    %v1300 = vand.u32 %v716, 4294901760
    %1301 = vmatmul.f32.gmra.mxu0 %v1300
    %v1302 = vpop.f32.mrf.mxu0
    %v1303 = vadd.f32 %v1222, %v1302
    %v1304 = vand.u32 %v719, 4294901760
    %1305 = vmatmul.f32.gmra.mxu0 %v1304
    %v1306 = vpop.f32.mrf.mxu0
    %v1307 = vadd.f32 %v1226, %v1306
    %v1308 = vand.u32 %v722, 4294901760
    %1309 = vmatmul.f32.gmra.mxu0 %v1308
    %v1310 = vpop.f32.mrf.mxu0
    %v1311 = vadd.f32 %v1230, %v1310
    %v1312 = vand.u32 %v725, 4294901760
    %1313 = vmatmul.f32.gmra.mxu0 %v1312
    %v1314 = vpop.f32.mrf.mxu0
    %v1315 = vadd.f32 %v1234, %v1314
    %v1316 = vand.u32 %v728, 4294901760
    %1317 = vmatmul.f32.gmra.mxu0 %v1316
    %v1318 = vpop.f32.mrf.mxu0
    %v1319 = vadd.f32 %v1238, %v1318
    %v1320 = vand.u32 %v731, 4294901760
    %1321 = vmatmul.f32.gmra.mxu0 %v1320
    %v1322 = vpop.f32.mrf.mxu0
    %v1323 = vadd.f32 %v1242, %v1322
    %v1324 = vand.u32 %v734, 4294901760
    %1325 = vmatmul.f32.gmra.mxu0 %v1324
    %v1326 = vpop.f32.mrf.mxu0
    %v1327 = vadd.f32 %v1246, %v1326
    %v1328 = vand.u32 %v737, 4294901760
    %1329 = vmatmul.f32.gmra.mxu0 %v1328
    %v1330 = vpop.f32.mrf.mxu0
    %v1331 = vadd.f32 %v1250, %v1330
    %v1332 = vand.u32 %v740, 4294901760
    %1333 = vmatmul.f32.gmra.mxu0 %v1332
    %v1334 = vpop.f32.mrf.mxu0
    %v1335 = vadd.f32 %v1254, %v1334
    %v1336 = vand.u32 %v743, 4294901760
    %1337 = vmatmul.f32.gmra.mxu0 %v1336
    %v1338 = vpop.f32.mrf.mxu0
    %v1339 = vadd.f32 %v1258, %v1338
    %v1340 = vand.u32 %v746, 4294901760
    %1341 = vmatmul.f32.gmra.mxu0 %v1340
    %v1342 = vpop.f32.mrf.mxu0
    %v1343 = vadd.f32 %v1262, %v1342
    %v1344 = vand.u32 %v749, 4294901760
    %1345 = vmatmul.f32.gmra.mxu0 %v1344
    %v1346 = vpop.f32.mrf.mxu0
    %v1347 = vadd.f32 %v1266, %v1346
    %1348 = vdwg.mxu0
    %v1349 = vmul.f32 %v641, 0.03125
    %v1350 = vmul.f32 %v645, 0.03125
    %v1351 = vmul.f32 %v649, 0.03125
    %v1352 = vmul.f32 %v653, 0.03125
    %v1353 = vmul.f32 %v657, 0.03125
    %v1354 = vmul.f32 %v661, 0.03125
    %v1355 = vmul.f32 %v665, 0.03125
    %v1356 = vmul.f32 %v669, 0.03125
    %v1357 = vmul.f32 %v673, 0.03125
    %v1358 = vmul.f32 %v677, 0.03125
    %v1359 = vmul.f32 %v681, 0.03125
    %v1360 = vmul.f32 %v685, 0.03125
    %v1361 = vmul.f32 %v689, 0.03125
    %v1362 = vmul.f32 %v693, 0.03125
    %v1363 = vmul.f32 %v697, 0.03125
    %v1364 = vmul.f32 %v701, 0.03125
    %v1365 = vmul.f32 %v1287, 0.03125
    %v1366 = vmul.f32 %v1291, 0.03125
    %v1367 = vmul.f32 %v1295, 0.03125
    %v1368 = vmul.f32 %v1299, 0.03125
    %v1369 = vmul.f32 %v1303, 0.03125
    %v1370 = vmul.f32 %v1307, 0.03125
    %v1371 = vmul.f32 %v1311, 0.03125
    %v1372 = vmul.f32 %v1315, 0.03125
    %v1373 = vmul.f32 %v1319, 0.03125
    %v1374 = vmul.f32 %v1323, 0.03125
    %v1375 = vmul.f32 %v1327, 0.03125
    %v1376 = vmul.f32 %v1331, 0.03125
    %v1377 = vmul.f32 %v1335, 0.03125
    %v1378 = vmul.f32 %v1339, 0.03125
    %v1379 = vmul.f32 %v1343, 0.03125
    %v1380 = vmul.f32 %v1347, 0.03125
    %v1381 = vmul.f32 %v1349, %v1349
    %v1382 = vmul.f32 %v1350, %v1350
    %v1383 = vmul.f32 %v1351, %v1351
    %v1384 = vmul.f32 %v1352, %v1352
    %v1385 = vmul.f32 %v1353, %v1353
    %v1386 = vmul.f32 %v1354, %v1354
    %v1387 = vmul.f32 %v1355, %v1355
    %v1388 = vmul.f32 %v1356, %v1356
    %v1389 = vmul.f32 %v1357, %v1357
    %v1390 = vmul.f32 %v1358, %v1358
    %v1391 = vmul.f32 %v1359, %v1359
    %v1392 = vmul.f32 %v1360, %v1360
    %v1393 = vmul.f32 %v1361, %v1361
    %v1394 = vmul.f32 %v1362, %v1362
    %v1395 = vmul.f32 %v1363, %v1363
    %v1396 = vmul.f32 %v1364, %v1364
    %v1397 = vsub.f32 %v1365, %v1381
    %v1398 = vsub.f32 %v1366, %v1382
    %v1399 = vsub.f32 %v1367, %v1383
    %v1400 = vsub.f32 %v1368, %v1384
    %v1401 = vsub.f32 %v1369, %v1385
    %v1402 = vsub.f32 %v1370, %v1386
    %v1403 = vsub.f32 %v1371, %v1387
    %v1404 = vsub.f32 %v1372, %v1388
    %v1405 = vsub.f32 %v1373, %v1389
    %v1406 = vsub.f32 %v1374, %v1390
    %v1407 = vsub.f32 %v1375, %v1391
    %v1408 = vsub.f32 %v1376, %v1392
    %v1409 = vsub.f32 %v1377, %v1393
    %v1410 = vsub.f32 %v1378, %v1394
    %v1411 = vsub.f32 %v1379, %v1395
    %v1412 = vsub.f32 %v1380, %v1396
    %v1413 = vmax.f32 %v1397, 0.0
    %v1414 = vmax.f32 %v1398, 0.0
    %v1415 = vmax.f32 %v1399, 0.0
    %v1416 = vmax.f32 %v1400, 0.0
    %v1417 = vmax.f32 %v1401, 0.0
    %v1418 = vmax.f32 %v1402, 0.0
    %v1419 = vmax.f32 %v1403, 0.0
    %v1420 = vmax.f32 %v1404, 0.0
    %v1421 = vmax.f32 %v1405, 0.0
    %v1422 = vmax.f32 %v1406, 0.0
    %v1423 = vmax.f32 %v1407, 0.0
    %v1424 = vmax.f32 %v1408, 0.0
    %v1425 = vmax.f32 %v1409, 0.0
    %v1426 = vmax.f32 %v1410, 0.0
    %v1427 = vmax.f32 %v1411, 0.0
    %v1428 = vmax.f32 %v1412, 0.0
    %v1429 = vadd.f32 %v1413, 1e-05
    %v1430 = vadd.f32 %v1414, 1e-05
    %v1431 = vadd.f32 %v1415, 1e-05
    %v1432 = vadd.f32 %v1416, 1e-05
    %v1433 = vadd.f32 %v1417, 1e-05
    %v1434 = vadd.f32 %v1418, 1e-05
    %v1435 = vadd.f32 %v1419, 1e-05
    %v1436 = vadd.f32 %v1420, 1e-05
    %v1437 = vadd.f32 %v1421, 1e-05
    %v1438 = vadd.f32 %v1422, 1e-05
    %v1439 = vadd.f32 %v1423, 1e-05
    %v1440 = vadd.f32 %v1424, 1e-05
    %v1441 = vadd.f32 %v1425, 1e-05
    %v1442 = vadd.f32 %v1426, 1e-05
    %v1443 = vadd.f32 %v1427, 1e-05
    %v1444 = vadd.f32 %v1428, 1e-05
    %v1445 = vrsqrt.pop %v1429
    %v1446 = vmul.f32 %v1445, %v1429
    %v1447 = vmul.f32 %v1446, %v1445
    %v1448 = vmul.f32 0.5, %v1447
    %v1449 = vsub.f32 1.5, %v1448
    %v1450 = vmul.f32 %v1445, %v1449
    %vm1451 = vweird.f32 %v1429
    %vm1452 = vweird.f32 %v1445
    %vm1453 = vmor %vm1451, %vm1452
    %v1454 = vsel %vm1453, %v1445, %v1450
    %v1455 = vrsqrt.pop %v1430
    %v1456 = vmul.f32 %v1455, %v1430
    %v1457 = vmul.f32 %v1456, %v1455
    %v1458 = vmul.f32 0.5, %v1457
    %v1459 = vsub.f32 1.5, %v1458
    %v1460 = vmul.f32 %v1455, %v1459
    %vm1461 = vweird.f32 %v1430
    %vm1462 = vweird.f32 %v1455
    %vm1463 = vmor %vm1461, %vm1462
    %v1464 = vsel %vm1463, %v1455, %v1460
    %v1465 = vrsqrt.pop %v1431
    %v1466 = vmul.f32 %v1465, %v1431
    %v1467 = vmul.f32 %v1466, %v1465
    %v1468 = vmul.f32 0.5, %v1467
    %v1469 = vsub.f32 1.5, %v1468
    %v1470 = vmul.f32 %v1465, %v1469
    %vm1471 = vweird.f32 %v1431
    %vm1472 = vweird.f32 %v1465
    %vm1473 = vmor %vm1471, %vm1472
    %v1474 = vsel %vm1473, %v1465, %v1470
    %v1475 = vrsqrt.pop %v1432
    %v1476 = vmul.f32 %v1475, %v1432
    %v1477 = vmul.f32 %v1476, %v1475
    %v1478 = vmul.f32 0.5, %v1477
    %v1479 = vsub.f32 1.5, %v1478
    %v1480 = vmul.f32 %v1475, %v1479
    %vm1481 = vweird.f32 %v1432
    %vm1482 = vweird.f32 %v1475
    %vm1483 = vmor %vm1481, %vm1482
    %v1484 = vsel %vm1483, %v1475, %v1480
    %v1485 = vrsqrt.pop %v1433
    %v1486 = vmul.f32 %v1485, %v1433
    %v1487 = vmul.f32 %v1486, %v1485
    %v1488 = vmul.f32 0.5, %v1487
    %v1489 = vsub.f32 1.5, %v1488
    %v1490 = vmul.f32 %v1485, %v1489
    %vm1491 = vweird.f32 %v1433
    %vm1492 = vweird.f32 %v1485
    %vm1493 = vmor %vm1491, %vm1492
    %v1494 = vsel %vm1493, %v1485, %v1490
    %v1495 = vrsqrt.pop %v1434
    %v1496 = vmul.f32 %v1495, %v1434
    %v1497 = vmul.f32 %v1496, %v1495
    %v1498 = vmul.f32 0.5, %v1497
    %v1499 = vsub.f32 1.5, %v1498
    %v1500 = vmul.f32 %v1495, %v1499
    %vm1501 = vweird.f32 %v1434
    %vm1502 = vweird.f32 %v1495
    %vm1503 = vmor %vm1501, %vm1502
    %v1504 = vsel %vm1503, %v1495, %v1500
    %v1505 = vrsqrt.pop %v1435
    %v1506 = vmul.f32 %v1505, %v1435
    %v1507 = vmul.f32 %v1506, %v1505
    %v1508 = vmul.f32 0.5, %v1507
    %v1509 = vsub.f32 1.5, %v1508
    %v1510 = vmul.f32 %v1505, %v1509
    %vm1511 = vweird.f32 %v1435
    %vm1512 = vweird.f32 %v1505
    %vm1513 = vmor %vm1511, %vm1512
    %v1514 = vsel %vm1513, %v1505, %v1510
    %v1515 = vrsqrt.pop %v1436
    %v1516 = vmul.f32 %v1515, %v1436
    %v1517 = vmul.f32 %v1516, %v1515
    %v1518 = vmul.f32 0.5, %v1517
    %v1519 = vsub.f32 1.5, %v1518
    %v1520 = vmul.f32 %v1515, %v1519
    %vm1521 = vweird.f32 %v1436
    %vm1522 = vweird.f32 %v1515
    %vm1523 = vmor %vm1521, %vm1522
    %v1524 = vsel %vm1523, %v1515, %v1520
    %v1525 = vrsqrt.pop %v1437
    %v1526 = vmul.f32 %v1525, %v1437
    %v1527 = vmul.f32 %v1526, %v1525
    %v1528 = vmul.f32 0.5, %v1527
    %v1529 = vsub.f32 1.5, %v1528
    %v1530 = vmul.f32 %v1525, %v1529
    %vm1531 = vweird.f32 %v1437
    %vm1532 = vweird.f32 %v1525
    %vm1533 = vmor %vm1531, %vm1532
    %v1534 = vsel %vm1533, %v1525, %v1530
    %v1535 = vrsqrt.pop %v1438
    %v1536 = vmul.f32 %v1535, %v1438
    %v1537 = vmul.f32 %v1536, %v1535
    %v1538 = vmul.f32 0.5, %v1537
    %v1539 = vsub.f32 1.5, %v1538
    %v1540 = vmul.f32 %v1535, %v1539
    %vm1541 = vweird.f32 %v1438
    %vm1542 = vweird.f32 %v1535
    %vm1543 = vmor %vm1541, %vm1542
    %v1544 = vsel %vm1543, %v1535, %v1540
    %v1545 = vrsqrt.pop %v1439
    %v1546 = vmul.f32 %v1545, %v1439
    %v1547 = vmul.f32 %v1546, %v1545
    %v1548 = vmul.f32 0.5, %v1547
    %v1549 = vsub.f32 1.5, %v1548
    %v1550 = vmul.f32 %v1545, %v1549
    %vm1551 = vweird.f32 %v1439
    %vm1552 = vweird.f32 %v1545
    %vm1553 = vmor %vm1551, %vm1552
    %v1554 = vsel %vm1553, %v1545, %v1550
    %v1555 = vrsqrt.pop %v1440
    %v1556 = vmul.f32 %v1555, %v1440
    %v1557 = vmul.f32 %v1556, %v1555
    %v1558 = vmul.f32 0.5, %v1557
    %v1559 = vsub.f32 1.5, %v1558
    %v1560 = vmul.f32 %v1555, %v1559
    %vm1561 = vweird.f32 %v1440
    %vm1562 = vweird.f32 %v1555
    %vm1563 = vmor %vm1561, %vm1562
    %v1564 = vsel %vm1563, %v1555, %v1560
    %v1565 = vrsqrt.pop %v1441
    %v1566 = vmul.f32 %v1565, %v1441
    %v1567 = vmul.f32 %v1566, %v1565
    %v1568 = vmul.f32 0.5, %v1567
    %v1569 = vsub.f32 1.5, %v1568
    %v1570 = vmul.f32 %v1565, %v1569
    %vm1571 = vweird.f32 %v1441
    %vm1572 = vweird.f32 %v1565
    %vm1573 = vmor %vm1571, %vm1572
    %v1574 = vsel %vm1573, %v1565, %v1570
    %v1575 = vrsqrt.pop %v1442
    %v1576 = vmul.f32 %v1575, %v1442
    %v1577 = vmul.f32 %v1576, %v1575
    %v1578 = vmul.f32 0.5, %v1577
    %v1579 = vsub.f32 1.5, %v1578
    %v1580 = vmul.f32 %v1575, %v1579
    %vm1581 = vweird.f32 %v1442
    %vm1582 = vweird.f32 %v1575
    %vm1583 = vmor %vm1581, %vm1582
    %v1584 = vsel %vm1583, %v1575, %v1580
    %v1585 = vrsqrt.pop %v1443
    %v1586 = vmul.f32 %v1585, %v1443
    %v1587 = vmul.f32 %v1586, %v1585
    %v1588 = vmul.f32 0.5, %v1587
    %v1589 = vsub.f32 1.5, %v1588
    %v1590 = vmul.f32 %v1585, %v1589
    %vm1591 = vweird.f32 %v1443
    %vm1592 = vweird.f32 %v1585
    %vm1593 = vmor %vm1591, %vm1592
    %v1594 = vsel %vm1593, %v1585, %v1590
    %v1595 = vrsqrt.pop %v1444
    %v1596 = vmul.f32 %v1595, %v1444
    %v1597 = vmul.f32 %v1596, %v1595
    %v1598 = vmul.f32 0.5, %v1597
    %v1599 = vsub.f32 1.5, %v1598
    %v1600 = vmul.f32 %v1595, %v1599
    %vm1601 = vweird.f32 %v1444
    %vm1602 = vweird.f32 %v1595
    %vm1603 = vmor %vm1601, %vm1602
    %v1604 = vsel %vm1603, %v1595, %v1600
    %1606 = vset.pattern.permute.xlu0 0
    %1607 = vperm.xlu0 %1606, %v1454
    %v1608 = vpop.permute.xlu0 %1607
    %1611 = vset.pattern.permute.xlu0 0
    %1612 = vperm.xlu0 %1611, %v1464
    %v1613 = vpop.permute.xlu0 %1612
    %1616 = vset.pattern.permute.xlu0 0
    %1617 = vperm.xlu0 %1616, %v1474
    %v1618 = vpop.permute.xlu0 %1617
    %1621 = vset.pattern.permute.xlu0 0
    %1622 = vperm.xlu0 %1621, %v1484
    %v1623 = vpop.permute.xlu0 %1622
    %1626 = vset.pattern.permute.xlu0 0
    %1627 = vperm.xlu0 %1626, %v1494
    %v1628 = vpop.permute.xlu0 %1627
    %1631 = vset.pattern.permute.xlu0 0
    %1632 = vperm.xlu0 %1631, %v1504
    %v1633 = vpop.permute.xlu0 %1632
    %1636 = vset.pattern.permute.xlu0 0
    %1637 = vperm.xlu0 %1636, %v1514
    %v1638 = vpop.permute.xlu0 %1637
    %1641 = vset.pattern.permute.xlu0 0
    %1642 = vperm.xlu0 %1641, %v1524
    %v1643 = vpop.permute.xlu0 %1642
    %1646 = vset.pattern.permute.xlu0 0
    %1647 = vperm.xlu0 %1646, %v1534
    %v1648 = vpop.permute.xlu0 %1647
    %1651 = vset.pattern.permute.xlu0 0
    %1652 = vperm.xlu0 %1651, %v1544
    %v1653 = vpop.permute.xlu0 %1652
    %1656 = vset.pattern.permute.xlu0 0
    %1657 = vperm.xlu0 %1656, %v1554
    %v1658 = vpop.permute.xlu0 %1657
    %1661 = vset.pattern.permute.xlu0 0
    %1662 = vperm.xlu0 %1661, %v1564
    %v1663 = vpop.permute.xlu0 %1662
    %1666 = vset.pattern.permute.xlu0 0
    %1667 = vperm.xlu0 %1666, %v1574
    %v1668 = vpop.permute.xlu0 %1667
    %1671 = vset.pattern.permute.xlu0 0
    %1672 = vperm.xlu0 %1671, %v1584
    %v1673 = vpop.permute.xlu0 %1672
    %1676 = vset.pattern.permute.xlu0 0
    %1677 = vperm.xlu0 %1676, %v1594
    %v1678 = vpop.permute.xlu0 %1677
    %1681 = vset.pattern.permute.xlu0 0
    %1682 = vperm.xlu0 %1681, %v1604
    %v1683 = vpop.permute.xlu0 %1682
    %v1685 = vmul.f32 %v24, %v1608
    %v1686 = vmul.f32 %v25, %v1613
    %v1687 = vmul.f32 %v26, %v1618
    %v1688 = vmul.f32 %v27, %v1623
    %v1689 = vmul.f32 %v28, %v1628
    %v1690 = vmul.f32 %v29, %v1633
    %v1691 = vmul.f32 %v30, %v1638
    %v1692 = vmul.f32 %v31, %v1643
    %v1693 = vmul.f32 %v32, %v1648
    %v1694 = vmul.f32 %v33, %v1653
    %v1695 = vmul.f32 %v34, %v1658
    %v1696 = vmul.f32 %v35, %v1663
    %v1697 = vmul.f32 %v36, %v1668
    %v1698 = vmul.f32 %v37, %v1673
    %v1699 = vmul.f32 %v38, %v1678
    %v1700 = vmul.f32 %v39, %v1683
    %v1701 = vsel %vm56, %v1685, 0.0
    %v1702 = vsel %vm56, %v1686, 0.0
    %v1703 = vadd.f32 %v1701, %v1702
    %v1704 = vsel %vm56, %v1687, 0.0
    %v1705 = vadd.f32 %v1703, %v1704
    %v1706 = vsel %vm56, %v1688, 0.0
    %v1707 = vadd.f32 %v1705, %v1706
    %v1708 = vsel %vm56, %v1689, 0.0
    %v1709 = vadd.f32 %v1707, %v1708
    %v1710 = vsel %vm56, %v1690, 0.0
    %v1711 = vadd.f32 %v1709, %v1710
    %v1712 = vsel %vm56, %v1691, 0.0
    %v1713 = vadd.f32 %v1711, %v1712
    %v1714 = vsel %vm56, %v1692, 0.0
    %v1715 = vadd.f32 %v1713, %v1714
    %v1716 = vrot.slane %v1715, 4
    %v1717 = vadd.f32 %v1715, %v1716
    %v1718 = vrot.slane %v1717, 2
    %v1719 = vadd.f32 %v1717, %v1718
    %v1720 = vrot.slane %v1719, 1
    %v1721 = vadd.f32 %v1719, %v1720
    %v1722 = vsel %vm56, %v1693, 0.0
    %v1723 = vsel %vm56, %v1694, 0.0
    %v1724 = vadd.f32 %v1722, %v1723
    %v1725 = vsel %vm56, %v1695, 0.0
    %v1726 = vadd.f32 %v1724, %v1725
    %v1727 = vsel %vm56, %v1696, 0.0
    %v1728 = vadd.f32 %v1726, %v1727
    %v1729 = vsel %vm56, %v1697, 0.0
    %v1730 = vadd.f32 %v1728, %v1729
    %v1731 = vsel %vm56, %v1698, 0.0
    %v1732 = vadd.f32 %v1730, %v1731
    %v1733 = vsel %vm56, %v1699, 0.0
    %v1734 = vadd.f32 %v1732, %v1733
    %v1735 = vsel %vm56, %v1700, 0.0
    %v1736 = vadd.f32 %v1734, %v1735
    %v1737 = vrot.slane %v1736, 4
    %v1738 = vadd.f32 %v1736, %v1737
    %v1739 = vrot.slane %v1738, 2
    %v1740 = vadd.f32 %v1738, %v1739
    %v1741 = vrot.slane %v1740, 1
    %v1742 = vadd.f32 %v1740, %v1741
    %vm1745 = vcmask 1041409
    %v1746 = vsel %vm1745, %v1742, %v1721
    %vm1748 = vcmask 254976
    %v1749 = vsel %vm1748, %v1746, 0.0
    %1750 = vadd.xlane.f32.xlu0 %v1749
    %v1751 = vpop.xlane.xlu0 %1750
    %v1752 = vmul.f32 %v1751, 0.03125
    %v1754 = vrot.slane %v1752, 1
    %v1757 = vsub.f32 %v1721, %v1752
    %v1758 = vsub.f32 %v1742, %v1754
    %v1759 = vmul.f32 %v1757, 0.015625
    %v1760 = vmul.f32 %v1758, 0.015625
    %v1761 = vld [vmem:[%s1] sm:$0x1]
    %v1763 = vperm.slane %v1761, 0
    %v1765 = vmul.f32 %v1759, %v1763
    %v1766 = vmul.f32 %v1760, %v1763
    %v1767 = vld [vmem:[%s2] sm:$0x1]
    %v1769 = vperm.slane %v1767, 0
    %v1771 = vadd.f32 %v1765, %v1769
    %v1772 = vadd.f32 %v1766, %v1769
    %v1775 = vrot.slane %v1772, 7
    %v1776 = vsel %vm1745, %v1775, %v1771
    %1778 = vst.msk [vmem:[#allocation4] sm:$0x3] %vm1748, %v1776
    %v1779 = vld [vmem:[%s3] sm:$0xff]
    %v1780 = vld [vmem:[%s3 + $0x8] sm:$0xff]
    %v1781 = vld [vmem:[%s3 + $0x10] sm:$0xff]
    %v1782 = vld [vmem:[%s3 + $0x18] sm:$0xff]
    %v1783 = vld [vmem:[%s4] sm:$0x1]
    %v1785 = vperm.slane %v1783, 0
    %v1787 = vsel %vm56, %v1776, 0
    %1789 = vmatpush.msra.mxu0 0.0
    %1790 = vmatpush.msra.mxu0 0.0
    %1791 = vmatpush.msra.mxu0 0.0
    %1792 = vmatpush.msra.mxu0 0.0
    %1793 = vmatpush.msra.mxu0 0.0
    %1794 = vmatpush.msra.mxu0 0.0
    %1795 = vmatpush.msra.mxu0 0.0
    %1796 = vmatpush.msra.mxu0 0.0
    %1797 = vmatpush.msra.mxu0 0.0
    %1798 = vmatpush.msra.mxu0 0.0
    %1799 = vmatpush.msra.mxu0 0.0
    %1800 = vmatpush.msra.mxu0 0.0
    %v1801 = vand.u32 %v1782, 4294901760
    %1802 = vmatpush.msra.mxu0 %v1801
    %v1803 = vand.u32 %v1781, 4294901760
    %1804 = vmatpush.msra.mxu0 %v1803
    %v1805 = vand.u32 %v1780, 4294901760
    %1806 = vmatpush.msra.mxu0 %v1805
    %v1807 = vand.u32 %v1779, 4294901760
    %1808 = vmatpush.msra.mxu0 %v1807
    %v1809 = vand.u32 %v1787, 4294901760
    %v1810 = vsub.f32 %v1787, %v1809
    %v1811 = vand.u32 %v1810, 4294901760
    %v1812 = vsub.f32 %v1810, %v1811
    %v1813 = vand.u32 %v1812, 4294901760
    %1814 = vmatmul.f32.gmra.mxu0 %v1813
    %v1815 = vpop.f32.mrf.mxu0
    %v1816 = vadd.f32 %v1785, %v1815
    %1817 = vdwg.mxu0
    %1818 = vmatpush.msra.mxu0 0.0
    %1819 = vmatpush.msra.mxu0 0.0
    %1820 = vmatpush.msra.mxu0 0.0
    %1821 = vmatpush.msra.mxu0 0.0
    %1822 = vmatpush.msra.mxu0 0.0
    %1823 = vmatpush.msra.mxu0 0.0
    %1824 = vmatpush.msra.mxu0 0.0
    %1825 = vmatpush.msra.mxu0 0.0
    %1826 = vmatpush.msra.mxu0 0.0
    %1827 = vmatpush.msra.mxu0 0.0
    %1828 = vmatpush.msra.mxu0 0.0
    %1829 = vmatpush.msra.mxu0 0.0
    %v1830 = vand.u32 %v1782, 4294901760
    %v1831 = vsub.f32 %v1782, %v1830
    %v1832 = vand.u32 %v1831, 4294901760
    %v1833 = vsub.f32 %v1831, %v1832
    %v1834 = vand.u32 %v1833, 4294901760
    %1835 = vmatpush.msra.mxu0 %v1834
    %v1836 = vand.u32 %v1781, 4294901760
    %v1837 = vsub.f32 %v1781, %v1836
    %v1838 = vand.u32 %v1837, 4294901760
    %v1839 = vsub.f32 %v1837, %v1838
    %v1840 = vand.u32 %v1839, 4294901760
    %1841 = vmatpush.msra.mxu0 %v1840
    %v1842 = vand.u32 %v1780, 4294901760
    %v1843 = vsub.f32 %v1780, %v1842
    %v1844 = vand.u32 %v1843, 4294901760
    %v1845 = vsub.f32 %v1843, %v1844
    %v1846 = vand.u32 %v1845, 4294901760
    %1847 = vmatpush.msra.mxu0 %v1846
    %v1848 = vand.u32 %v1779, 4294901760
    %v1849 = vsub.f32 %v1779, %v1848
    %v1850 = vand.u32 %v1849, 4294901760
    %v1851 = vsub.f32 %v1849, %v1850
    %v1852 = vand.u32 %v1851, 4294901760
    %1853 = vmatpush.msra.mxu0 %v1852
    %v1854 = vand.u32 %v1787, 4294901760
    %1855 = vmatmul.f32.gmra.mxu0 %v1854
    %v1856 = vpop.f32.mrf.mxu0
    %v1857 = vadd.f32 %v1816, %v1856
    %1858 = vdwg.mxu0
    %1859 = vmatpush.msra.mxu0 0.0
    %1860 = vmatpush.msra.mxu0 0.0
    %1861 = vmatpush.msra.mxu0 0.0
    %1862 = vmatpush.msra.mxu0 0.0
    %1863 = vmatpush.msra.mxu0 0.0
    %1864 = vmatpush.msra.mxu0 0.0
    %1865 = vmatpush.msra.mxu0 0.0
    %1866 = vmatpush.msra.mxu0 0.0
    %1867 = vmatpush.msra.mxu0 0.0
    %1868 = vmatpush.msra.mxu0 0.0
    %1869 = vmatpush.msra.mxu0 0.0
    %1870 = vmatpush.msra.mxu0 0.0
    %v1871 = vand.u32 %v1782, 4294901760
    %v1872 = vsub.f32 %v1782, %v1871
    %1873 = vmatpush.msra.mxu0 %v1872
    %v1874 = vand.u32 %v1781, 4294901760
    %v1875 = vsub.f32 %v1781, %v1874
    %1876 = vmatpush.msra.mxu0 %v1875
    %v1877 = vand.u32 %v1780, 4294901760
    %v1878 = vsub.f32 %v1780, %v1877
    %1879 = vmatpush.msra.mxu0 %v1878
    %v1880 = vand.u32 %v1779, 4294901760
    %v1881 = vsub.f32 %v1779, %v1880
    %1882 = vmatpush.msra.mxu0 %v1881
    %v1883 = vand.u32 %v1787, 4294901760
    %v1884 = vsub.f32 %v1787, %v1883
    %1885 = vmatmul.f32.gmra.mxu0 %v1884
    %v1886 = vpop.f32.mrf.mxu0
    %v1887 = vadd.f32 %v1857, %v1886
    %1888 = vdwg.mxu0
    %1889 = vmatpush.msra.mxu0 0.0
    %1890 = vmatpush.msra.mxu0 0.0
    %1891 = vmatpush.msra.mxu0 0.0
    %1892 = vmatpush.msra.mxu0 0.0
    %1893 = vmatpush.msra.mxu0 0.0
    %1894 = vmatpush.msra.mxu0 0.0
    %1895 = vmatpush.msra.mxu0 0.0
    %1896 = vmatpush.msra.mxu0 0.0
    %1897 = vmatpush.msra.mxu0 0.0
    %1898 = vmatpush.msra.mxu0 0.0
    %1899 = vmatpush.msra.mxu0 0.0
    %1900 = vmatpush.msra.mxu0 0.0
    %v1901 = vand.u32 %v1782, 4294901760
    %1902 = vmatpush.msra.mxu0 %v1901
    %v1903 = vand.u32 %v1781, 4294901760
    %1904 = vmatpush.msra.mxu0 %v1903
    %v1905 = vand.u32 %v1780, 4294901760
    %1906 = vmatpush.msra.mxu0 %v1905
    %v1907 = vand.u32 %v1779, 4294901760
    %1908 = vmatpush.msra.mxu0 %v1907
    %v1909 = vand.u32 %v1787, 4294901760
    %v1910 = vsub.f32 %v1787, %v1909
    %v1911 = vand.u32 %v1910, 4294901760
    %1912 = vmatmul.f32.gmra.mxu0 %v1911
    %v1913 = vpop.f32.mrf.mxu0
    %v1914 = vadd.f32 %v1887, %v1913
    %1915 = vdwg.mxu0
    %1916 = vmatpush.msra.mxu0 0.0
    %1917 = vmatpush.msra.mxu0 0.0
    %1918 = vmatpush.msra.mxu0 0.0
    %1919 = vmatpush.msra.mxu0 0.0
    %1920 = vmatpush.msra.mxu0 0.0
    %1921 = vmatpush.msra.mxu0 0.0
    %1922 = vmatpush.msra.mxu0 0.0
    %1923 = vmatpush.msra.mxu0 0.0
    %1924 = vmatpush.msra.mxu0 0.0
    %1925 = vmatpush.msra.mxu0 0.0
    %1926 = vmatpush.msra.mxu0 0.0
    %1927 = vmatpush.msra.mxu0 0.0
    %v1928 = vand.u32 %v1782, 4294901760
    %v1929 = vsub.f32 %v1782, %v1928
    %v1930 = vand.u32 %v1929, 4294901760
    %1931 = vmatpush.msra.mxu0 %v1930
    %v1932 = vand.u32 %v1781, 4294901760
    %v1933 = vsub.f32 %v1781, %v1932
    %v1934 = vand.u32 %v1933, 4294901760
    %1935 = vmatpush.msra.mxu0 %v1934
    %v1936 = vand.u32 %v1780, 4294901760
    %v1937 = vsub.f32 %v1780, %v1936
    %v1938 = vand.u32 %v1937, 4294901760
    %1939 = vmatpush.msra.mxu0 %v1938
    %v1940 = vand.u32 %v1779, 4294901760
    %v1941 = vsub.f32 %v1779, %v1940
    %v1942 = vand.u32 %v1941, 4294901760
    %1943 = vmatpush.msra.mxu0 %v1942
    %v1944 = vand.u32 %v1787, 4294901760
    %1945 = vmatmul.f32.gmra.mxu0 %v1944
    %v1946 = vpop.f32.mrf.mxu0
    %v1947 = vadd.f32 %v1914, %v1946
    %1948 = vdwg.mxu0
    %1949 = vmatpush.msra.mxu0 0.0
    %1950 = vmatpush.msra.mxu0 0.0
    %1951 = vmatpush.msra.mxu0 0.0
    %1952 = vmatpush.msra.mxu0 0.0
    %1953 = vmatpush.msra.mxu0 0.0
    %1954 = vmatpush.msra.mxu0 0.0
    %1955 = vmatpush.msra.mxu0 0.0
    %1956 = vmatpush.msra.mxu0 0.0
    %1957 = vmatpush.msra.mxu0 0.0
    %1958 = vmatpush.msra.mxu0 0.0
    %1959 = vmatpush.msra.mxu0 0.0
    %1960 = vmatpush.msra.mxu0 0.0
    %v1961 = vand.u32 %v1782, 4294901760
    %1962 = vmatpush.msra.mxu0 %v1961
    %v1963 = vand.u32 %v1781, 4294901760
    %1964 = vmatpush.msra.mxu0 %v1963
    %v1965 = vand.u32 %v1780, 4294901760
    %1966 = vmatpush.msra.mxu0 %v1965
    %v1967 = vand.u32 %v1779, 4294901760
    %1968 = vmatpush.msra.mxu0 %v1967
    %v1969 = vand.u32 %v1787, 4294901760
    %1970 = vmatmul.f32.gmra.mxu0 %v1969
    %v1971 = vpop.f32.mrf.mxu0
    %v1972 = vadd.f32 %v1947, %v1971
    %1973 = vdwg.mxu0
    %1974 = vst [vmem:[#allocation2] sm:$0x3] %v1972
    // Predicated region
    $region22: #{_forward.1} parent=1 // pred_check
      _
    $region23: #{_forward.1} parent=1 // pred_check_branch
      %1976 = sbr.rel (0) target = $region25
    $region24: #{_forward.1} parent=1 // pred_region
      %1978 = vsyncadd [#allocation3], 0
      %s1980 = sshll.u32 [#allocation2], 4
      %s1981 = int_to_ptr.vmem [resolvable:$true] %s1980
      %s1982 = sshll.u32 %s5, 4
      %s1983 = int_to_ptr.hbm [resolvable:$true] %s1982
      %1985 = dma.vmem_to_hbm [thread:$0]  %s1981, 32, %s1983, [#allocation3]
    $region25: #{_forward.1} parent=1 // pred_fallthru
      _
    // Predicated region
    $region26: #{_forward.1} parent=1 // pred_check
      _
    $region27: #{_forward.1} parent=1 // pred_check_branch
      %1987 = sbr.rel (0) target = $region29
    $region28: #{_forward.1} parent=1 // pred_region
      %1989 = vsyncadd [#allocation5], 0
      %s1991 = sshll.u32 [#allocation4], 4
      %s1992 = int_to_ptr.vmem [resolvable:$true] %s1991
      %s1993 = sshll.u32 %s6, 4
      %s1994 = int_to_ptr.hbm [resolvable:$true] %s1993
      %1996 = dma.vmem_to_hbm [thread:$0]  %s1992, 32, %s1994, [#allocation5]
    $region29: #{_forward.1} parent=1 // pred_fallthru
      _
    // Predicated region
    $region30: #{_forward.1} parent=1 // pred_check
      _
    $region31: #{_forward.1} parent=1 // pred_check_branch
      %1998 = sbr.rel (0) target = $region33
    $region32: #{_forward.1} parent=1 // pred_region
      %2000 = dma.done [#allocation3], 32
    $region33: #{_forward.1} parent=1 // pred_fallthru
      _
    // Predicated region
    $region34: #{_forward.1} parent=1 // pred_check
      _
    $region35: #{_forward.1} parent=1 // pred_check_branch
      %2002 = sbr.rel (0) target = $region37
    $region36: #{_forward.1} parent=1 // pred_region
      %2004 = dma.done [#allocation5], 32
    $region37: #{_forward.1} parent=1 // pred_fallthru
      _
    %2005 = vsyncpa [#allocation3], 1
    %2006 = vsyncpa [#allocation5], 1

</llo_original>
